<compile_context>
chip_gen: v7x
topology: tpu7x:2x2x1
jax: 0.10.0
libtpu: 0.0.40
codegen_flags: <defaults>
</compile_context>

<pallas_src>
import jax
import jax.numpy as jnp
from jax.experimental import pallas as pl
from jax.experimental.pallas import tpu as pltpu

# ----------------------------- small BLIP config -----------------------------
CFG = dict(
    batch=2,
    channels=3,
    image=16,
    patch=8,
    hidden=32,
    heads=2,
    intermediate=64,
    layers=2,
    num_labels=4,
    ln_eps=1e-5,
)
LANE = 128  # classifier output padded to a lane-dense 128-wide slab


# ------------------------------ in-kernel math --------------------------------
def _layernorm(x, g, b, eps):
    # two-pass variance E[(x-mu)^2] (review: avoids cancellation at real sizes)
    mu = jnp.mean(x, axis=-1, keepdims=True)
    xc = x - mu
    var = jnp.mean(xc * xc, axis=-1, keepdims=True)
    return xc * jax.lax.rsqrt(var + eps) * g + b


def _gelu_tanh(x):
    # tanh-approx GELU: transcendental goes to the EUP slot instead of ~10 VALU
    # ops of the erf polynomial.  Tiny (<1e-3) numeric delta vs HF exact "gelu".
    c = 0.7978845608028654  # sqrt(2/pi)
    return 0.5 * x * (1.0 + jnp.tanh(c * (x + 0.044715 * x * x * x)))


# ------------------------------ fused forward kernel ---------------------------
def _make_kernel(S, S_pad, nP, D, Hh, Dh, eps, scale):
    bf16 = jnp.bfloat16

    def kernel(patches_ref, patch_w_ref, patch_b_ref, cls_emb_ref, pos_emb_ref,
               ln1_g_ref, ln1_b_ref, qkv_w_ref, qkv_b_ref, proj_w_ref, proj_b_ref,
               ln2_g_ref, ln2_b_ref, fc1_w_ref, fc1_b_ref, fc2_w_ref, fc2_b_ref,
               post_g_ref, post_b_ref, cls_w_ref, cls_b_ref,
               logits_ref, x_sc):
        l = pl.program_id(1)

        # --- BlipVisionEmbeddings (only on the first layer step of each image):
        #     conv(stride==patch) as matmul, cls + position embeddings written
        #     into the padded activation scratch via row-slice stores.
        @pl.when(l == 0)
        def _embed():
            pe = jnp.dot(patches_ref[...], patch_w_ref[...],
                         preferred_element_type=jnp.float32) + patch_b_ref[...]   # (nP, D)
            x_sc[...] = jnp.zeros_like(x_sc)                                      # zero pad rows
            x_sc[0:1, :] = cls_emb_ref[...] + pos_emb_ref[0:1, :]
            x_sc[pl.ds(1, nP), :] = pe + pos_emb_ref[pl.ds(1, nP), :]

        x = x_sc[...]                                                             # (S_pad, D) f32

        # ------------------------- attention block -------------------------
        res = x
        hn = _layernorm(x, ln1_g_ref[...], ln1_b_ref[...], eps)
        hn_h = jnp.broadcast_to(hn.astype(bf16), (Hh, S_pad, D))
        # head-major fused QKV projection: per head, columns are [q_h | k_h | v_h]
        qkv = jnp.einsum('hsd,hde->hse', hn_h, qkv_w_ref[...],
                         preferred_element_type=jnp.float32) + qkv_b_ref[...]     # (Hh, S_pad, 3Dh)
        q = qkv[:, :, 0 * Dh:1 * Dh].astype(bf16)
        k = qkv[:, :, 1 * Dh:2 * Dh].astype(bf16)
        v = qkv[:, :, 2 * Dh:3 * Dh].astype(bf16)

        s = jnp.einsum('hqd,hkd->hqk', q, k,
                       preferred_element_type=jnp.float32) * scale                # (Hh, S_pad, S_pad)
        if S_pad > S:  # mask padded key rows
            kmask = jax.lax.broadcasted_iota(jnp.int32, (Hh, S_pad, S_pad), 2) < S
            s = jnp.where(kmask, s, -1e30)
        m = jnp.max(s, axis=-1, keepdims=True)
        p = jnp.exp(s - m)
        p = p * pl.reciprocal(jnp.sum(p, axis=-1, keepdims=True), approx=True)

        ctx = jnp.einsum('hqk,hkd->hqd', p.astype(bf16), v,
                         preferred_element_type=jnp.float32)                      # (Hh, S_pad, Dh)
        # per-head output projection, summed over heads == concat(heads) @ Wo
        attn = jnp.einsum('hqd,hdo->hqo', ctx.astype(bf16), proj_w_ref[...],
                          preferred_element_type=jnp.float32)                     # (Hh, S_pad, D)
        x = jnp.sum(attn, axis=0) + proj_b_ref[...] + res                         # (S_pad, D)

        # ---------------------------- MLP block ----------------------------
        res = x
        hn = _layernorm(x, ln2_g_ref[...], ln2_b_ref[...], eps)
        h1 = jnp.dot(hn.astype(bf16), fc1_w_ref[...],
                     preferred_element_type=jnp.float32) + fc1_b_ref[...]          # (S_pad, I)
        h1 = _gelu_tanh(h1)
        x = jnp.dot(h1.astype(bf16), fc2_w_ref[...],
                    preferred_element_type=jnp.float32) + fc2_b_ref[...] + res

        x_sc[...] = x                                                             # carry to next layer

        # --- head (only on the last layer step): post-LN applied twice to the
        #     cls token (matches HF BlipVisionModel: sequence LN then pooler LN),
        #     then the lane-dense classifier.
        @pl.when(l == pl.num_programs(1) - 1)
        def _head():
            cls_row = x[0:1, :]                                                   # (1, D)
            pooled = _layernorm(cls_row, post_g_ref[...], post_b_ref[...], eps)
            pooled = _layernorm(pooled, post_g_ref[...], post_b_ref[...], eps)
            logits = jnp.dot(pooled.astype(bf16), cls_w_ref[...],
                             preferred_element_type=jnp.float32) + cls_b_ref[...]  # (1, LANE)
            logits_ref[...] = logits.astype(logits_ref.dtype)

    return kernel


# ------------------------------ parameter setup --------------------------------
def init_params(key):
    D, I, C, P, L = CFG["hidden"], CFG["intermediate"], CFG["channels"], CFG["patch"], CFG["layers"]
    n_pos = (CFG["image"] // P) ** 2 + 1
    keys = iter(jax.random.split(key, 16))

    def w(shape, scale=0.02):
        return (scale * jax.random.normal(next(keys), shape)).astype(jnp.float32)

    return {
        # conv weight (D, C, p, p) stored flattened+transposed as (C*p*p, D)
        "patch_w": w((C * P * P, D)),
        "patch_b": jnp.zeros((D,), jnp.float32),
        "class_embedding": w((1, 1, D)),
        "pos_embedding": w((1, n_pos, D)),
        "post_ln_g": jnp.ones((D,), jnp.float32),
        "post_ln_b": jnp.zeros((D,), jnp.float32),
        "cls_w": w((D, CFG["num_labels"])),
        "cls_b": jnp.zeros((CFG["num_labels"],), jnp.float32),
        # per-layer params stacked on a leading L axis (streamed by the layer grid axis);
        # qkv layout matches HF BlipAttention: columns [q | k | v], heads contiguous within each.
        "ln1_g": jnp.ones((L, 1, D), jnp.float32), "ln1_b": jnp.zeros((L, 1, D), jnp.float32),
        "qkv_w": w((L, D, 3 * D)), "qkv_b": jnp.zeros((L, 1, 3 * D), jnp.float32),
        "proj_w": w((L, D, D)), "proj_b": jnp.zeros((L, 1, D), jnp.float32),
        "ln2_g": jnp.ones((L, 1, D), jnp.float32), "ln2_b": jnp.zeros((L, 1, D), jnp.float32),
        "fc1_w": w((L, D, I)), "fc1_b": jnp.zeros((L, 1, I), jnp.float32),
        "fc2_w": w((L, I, D)), "fc2_b": jnp.zeros((L, 1, D), jnp.float32),
    }


# --------------------------------- forward -------------------------------------
def blip_for_image_classification(params, pixel_values):
    B, C, H, W = pixel_values.shape
    P, D, Hh, L = CFG["patch"], CFG["hidden"], CFG["heads"], CFG["layers"]
    I, NL = CFG["intermediate"], CFG["num_labels"]
    Dh = D // Hh
    nP = (H // P) * (W // P)
    S = nP + 1
    S_pad = ((S + 7) // 8) * 8
    CPP = C * P * P
    scale = float(Dh) ** -0.5
    bf16 = jnp.bfloat16

    # patch extraction stays in JAX (pure layout op, done once); bf16 matmul operands
    xp = pixel_values.reshape(B, C, H // P, P, W // P, P)
    patches = xp.transpose(0, 2, 4, 1, 3, 5).reshape(B, nP, CPP).astype(bf16)

    patch_w = params["patch_w"].astype(bf16)

    # head-major re-layout of the fused QKV projection: (L, Hh, D, 3*Dh),
    # with per-head columns ordered [q_h | k_h | v_h]
    qkv_w = params["qkv_w"].reshape(L, D, 3, Hh, Dh).transpose(0, 3, 1, 2, 4)
    qkv_w = qkv_w.reshape(L, Hh, D, 3 * Dh).astype(bf16)
    qkv_b = params["qkv_b"].reshape(L, 3, Hh, Dh).transpose(0, 2, 1, 3).reshape(L, Hh, 1, 3 * Dh)
    # output projection rows grouped per head: (L, Hh, Dh, D)
    proj_w = params["proj_w"].reshape(L, Hh, Dh, D).astype(bf16)

    fc1_w = params["fc1_w"].astype(bf16)
    fc2_w = params["fc2_w"].astype(bf16)

    # lane-dense classifier: pad label dim to 128 zero columns; sliced back below
    cls_w_pad = jnp.zeros((D, LANE), jnp.float32).at[:, :NL].set(params["cls_w"]).astype(bf16)
    cls_b_pad = jnp.zeros((1, LANE), jnp.float32).at[:, :NL].set(params["cls_b"])

    args = [
        patches, patch_w, params["patch_b"].reshape(1, D),
        params["class_embedding"].reshape(1, D),
        params["pos_embedding"].reshape(-1, D)[:S, :],
        params["ln1_g"], params["ln1_b"],
        qkv_w, qkv_b, proj_w, params["proj_b"],
        params["ln2_g"], params["ln2_b"],
        fc1_w, params["fc1_b"], fc2_w, params["fc2_b"],
        params["post_ln_g"].reshape(1, D), params["post_ln_b"].reshape(1, D),
        cls_w_pad, cls_b_pad,
    ]

    def const2(i, l): return (0, 0)
    def batch3(i, l): return (i, 0, 0)
    def layer3(i, l): return (l, 0, 0)
    def layer4(i, l): return (l, 0, 0, 0)

    in_specs = [
        pl.BlockSpec((None, nP, CPP), batch3),            # patches      (per image)
        pl.BlockSpec((CPP, D), const2),                   # patch_w      (resident)
        pl.BlockSpec((1, D), const2),                     # patch_b
        pl.BlockSpec((1, D), const2),                     # class_embedding
        pl.BlockSpec((S, D), const2),                     # pos_embedding
        pl.BlockSpec((None, 1, D), layer3),               # ln1_g        (per layer, streamed)
        pl.BlockSpec((None, 1, D), layer3),               # ln1_b
        pl.BlockSpec((None, Hh, D, 3 * Dh), layer4),      # qkv_w
        pl.BlockSpec((None, Hh, 1, 3 * Dh), layer4),      # qkv_b
        pl.BlockSpec((None, Hh, Dh, D), layer4),          # proj_w
        pl.BlockSpec((None, 1, D), layer3),               # proj_b
        pl.BlockSpec((None, 1, D), layer3),               # ln2_g
        pl.BlockSpec((None, 1, D), layer3),               # ln2_b
        pl.BlockSpec((None, D, I), layer3),               # fc1_w
        pl.BlockSpec((None, 1, I), layer3),               # fc1_b
        pl.BlockSpec((None, I, D), layer3),               # fc2_w
        pl.BlockSpec((None, 1, D), layer3),               # fc2_b
        pl.BlockSpec((1, D), const2),                     # post_ln_g
        pl.BlockSpec((1, D), const2),                     # post_ln_b
        pl.BlockSpec((D, LANE), const2),                  # cls_w (padded, lane-dense)
        pl.BlockSpec((1, LANE), const2),                  # cls_b (padded)
    ]

    kernel = _make_kernel(S, S_pad, nP, D, Hh, Dh, CFG["ln_eps"], scale)

    logits_pad = pl.pallas_call(
        kernel,
        out_shape=jax.ShapeDtypeStruct((B, 1, LANE), jnp.float32),
        grid=(B, L),
        in_specs=in_specs,
        out_specs=pl.BlockSpec((None, 1, LANE), batch3),
        scratch_shapes=[pltpu.VMEM((S_pad, D), jnp.float32)],   # activation carried across layers
        compiler_params=pltpu.CompilerParams(
            dimension_semantics=("parallel", "arbitrary")),
    )(*args)

    return {"logits": logits_pad[:, 0, :NL]}


# ----------------------------------- main ---------------------------------------
if __name__ == "__main__":
    key = jax.random.PRNGKey(0)
    pkey, xkey = jax.random.split(key)
    params = init_params(pkey)
    pixel_values = jax.random.normal(
        xkey, (CFG["batch"], CFG["channels"], CFG["image"], CFG["image"]), jnp.float32
    )

    fwd = jax.jit(blip_for_image_classification)
    out = fwd(params, pixel_values)
    logits = jax.block_until_ready(out["logits"])

    assert logits.shape == (CFG["batch"], CFG["num_labels"])
    assert logits.dtype == jnp.float32
    assert bool(jnp.all(jnp.isfinite(logits)))
    print("KERNEL_OK")
</pallas_src>

<mosaic_0001>
module attributes {stable_mosaic.version = 11 : i64} {
  func.func @kernel(%arg0: i32, %arg1: i32, %arg2: memref<1x4x192xbf16, #tpu.memory_space<vmem>>, %arg3: memref<192x32xbf16, #tpu.memory_space<vmem>>, %arg4: memref<1x32xf32, #tpu.memory_space<vmem>>, %arg5: memref<1x32xf32, #tpu.memory_space<vmem>>, %arg6: memref<5x32xf32, #tpu.memory_space<vmem>>, %arg7: memref<1x1x32xf32, #tpu.memory_space<vmem>>, %arg8: memref<1x1x32xf32, #tpu.memory_space<vmem>>, %arg9: memref<1x2x32x48xbf16, #tpu.memory_space<vmem>>, %arg10: memref<1x2x1x48xf32, #tpu.memory_space<vmem>>, %arg11: memref<1x2x16x32xbf16, #tpu.memory_space<vmem>>, %arg12: memref<1x1x32xf32, #tpu.memory_space<vmem>>, %arg13: memref<1x1x32xf32, #tpu.memory_space<vmem>>, %arg14: memref<1x1x32xf32, #tpu.memory_space<vmem>>, %arg15: memref<1x32x64xbf16, #tpu.memory_space<vmem>>, %arg16: memref<1x1x64xf32, #tpu.memory_space<vmem>>, %arg17: memref<1x64x32xbf16, #tpu.memory_space<vmem>>, %arg18: memref<1x1x32xf32, #tpu.memory_space<vmem>>, %arg19: memref<1x32xf32, #tpu.memory_space<vmem>>, %arg20: memref<1x32xf32, #tpu.memory_space<vmem>>, %arg21: memref<32x128xbf16, #tpu.memory_space<vmem>>, %arg22: memref<1x128xf32, #tpu.memory_space<vmem>>, %arg23: memref<1x1x128xf32, #tpu.memory_space<vmem>>, %arg24: memref<8x32xf32, #tpu.memory_space<vmem>>) attributes {dimension_semantics = [#tpu.dimension_semantics<parallel>, #tpu.dimension_semantics<arbitrary>], iteration_bounds = array<i64: 2, 2>, scalar_prefetch = 0 : i64, scratch_operands = 1 : i64, tpu.core_type = #tpu.core_type<tc>, window_params = [{transform_indices = @transform_0, window_bounds = array<i64: 1, 4, 192>}, {pipeline_mode = #tpu.pipeline_mode<synchronous>, transform_indices = @transform_1, window_bounds = array<i64: 192, 32>}, {pipeline_mode = #tpu.pipeline_mode<synchronous>, transform_indices = @transform_2, window_bounds = array<i64: 1, 32>}, {pipeline_mode = #tpu.pipeline_mode<synchronous>, transform_indices = @transform_3, window_bounds = array<i64: 1, 32>}, {pipeline_mode = #tpu.pipeline_mode<synchronous>, transform_indices = @transform_4, window_bounds = array<i64: 5, 32>}, {transform_indices = @transform_5, window_bounds = array<i64: 1, 1, 32>}, {transform_indices = @transform_6, window_bounds = array<i64: 1, 1, 32>}, {transform_indices = @transform_7, window_bounds = array<i64: 1, 2, 32, 48>}, {transform_indices = @transform_8, window_bounds = array<i64: 1, 2, 1, 48>}, {transform_indices = @transform_9, window_bounds = array<i64: 1, 2, 16, 32>}, {transform_indices = @transform_10, window_bounds = array<i64: 1, 1, 32>}, {transform_indices = @transform_11, window_bounds = array<i64: 1, 1, 32>}, {transform_indices = @transform_12, window_bounds = array<i64: 1, 1, 32>}, {transform_indices = @transform_13, window_bounds = array<i64: 1, 32, 64>}, {transform_indices = @transform_14, window_bounds = array<i64: 1, 1, 64>}, {transform_indices = @transform_15, window_bounds = array<i64: 1, 64, 32>}, {transform_indices = @transform_16, window_bounds = array<i64: 1, 1, 32>}, {pipeline_mode = #tpu.pipeline_mode<synchronous>, transform_indices = @transform_17, window_bounds = array<i64: 1, 32>}, {pipeline_mode = #tpu.pipeline_mode<synchronous>, transform_indices = @transform_18, window_bounds = array<i64: 1, 32>}, {pipeline_mode = #tpu.pipeline_mode<synchronous>, transform_indices = @transform_19, window_bounds = array<i64: 32, 128>}, {pipeline_mode = #tpu.pipeline_mode<synchronous>, transform_indices = @transform_20, window_bounds = array<i64: 1, 128>}, {transform_indices = @transform_21, window_bounds = array<i64: 1, 1, 128>}]} {
    %c0_i32 = arith.constant 0 : i32
    %0 = arith.cmpi eq, %arg1, %c0_i32 : i32
    %1 = arith.extui %0 : i1 to i32
    %c0_i32_0 = arith.constant 0 : i32
    %2 = arith.cmpi ne, %1, %c0_i32_0 : i32
    scf.if %2 {
      %c0_68 = arith.constant 0 : index
      %c0_69 = arith.constant 0 : index
      %c0_70 = arith.constant 0 : index
      %132 = vector.load %arg2[%c0_68, %c0_69, %c0_70] : memref<1x4x192xbf16, #tpu.memory_space<vmem>>, vector<1x4x192xbf16>
      %133 = vector.shape_cast %132 : vector<1x4x192xbf16> to vector<4x192xbf16>
      %c0_71 = arith.constant 0 : index
      %c0_72 = arith.constant 0 : index
      %134 = vector.load %arg3[%c0_71, %c0_72] : memref<192x32xbf16, #tpu.memory_space<vmem>>, vector<192x32xbf16>
      %cst_73 = arith.constant dense<0.000000e+00> : vector<4x32xf32>
      %135 = tpu.matmul %133, %134, %cst_73 {dimension_numbers = #tpu.dot_dimension_numbers<[1], [0], [0], [1], [0, 0, 1, 1], [], []>} : vector<4x192xbf16>, vector<192x32xbf16>, vector<4x32xf32> -> vector<4x32xf32>
      %c0_74 = arith.constant 0 : index
      %c0_75 = arith.constant 0 : index
      %136 = vector.load %arg4[%c0_74, %c0_75] : memref<1x32xf32, #tpu.memory_space<vmem>>, vector<1x32xf32>
      %137 = vector.broadcast %136 : vector<1x32xf32> to vector<4x32xf32>
      %138 = arith.addf %135, %137 : vector<4x32xf32>
      %cst_76 = arith.constant 0.000000e+00 : f32
      %139 = vector.broadcast %cst_76 : f32 to vector<8x32xf32>
      %c0_77 = arith.constant 0 : index
      %c0_78 = arith.constant 0 : index
      %140 = vector.load %arg24[%c0_77, %c0_78] : memref<8x32xf32, #tpu.memory_space<vmem>>, vector<8x32xf32>
      tpu.vector_store %arg24[%c0_77, %c0_78], %139 {strides = array<i32>} : memref<8x32xf32, #tpu.memory_space<vmem>>, vector<8x32xf32>,
      %c0_79 = arith.constant 0 : index
      %c0_80 = arith.constant 0 : index
      %141 = vector.load %arg5[%c0_79, %c0_80] : memref<1x32xf32, #tpu.memory_space<vmem>>, vector<1x32xf32>
      %c0_81 = arith.constant 0 : index
      %c0_82 = arith.constant 0 : index
      %142 = vector.load %arg6[%c0_81, %c0_82] : memref<5x32xf32, #tpu.memory_space<vmem>>, vector<1x32xf32>
      %143 = arith.addf %141, %142 : vector<1x32xf32>
      %c0_83 = arith.constant 0 : index
      %c0_84 = arith.constant 0 : index
      %144 = vector.load %arg24[%c0_83, %c0_84] : memref<8x32xf32, #tpu.memory_space<vmem>>, vector<1x32xf32>
      tpu.vector_store %arg24[%c0_83, %c0_84], %143 {strides = array<i32>} : memref<8x32xf32, #tpu.memory_space<vmem>>, vector<1x32xf32>,
      %c1 = arith.constant 1 : index
      %c0_85 = arith.constant 0 : index
      %145 = vector.load %arg6[%c1, %c0_85] : memref<5x32xf32, #tpu.memory_space<vmem>>, vector<4x32xf32>
      %146 = arith.addf %138, %145 : vector<4x32xf32>
      %c1_86 = arith.constant 1 : index
      %c0_87 = arith.constant 0 : index
      %147 = vector.load %arg24[%c1_86, %c0_87] : memref<8x32xf32, #tpu.memory_space<vmem>>, vector<4x32xf32>
      tpu.vector_store %arg24[%c1_86, %c0_87], %146 {strides = array<i32>} : memref<8x32xf32, #tpu.memory_space<vmem>>, vector<4x32xf32>,
    } else {
    }
    %c0 = arith.constant 0 : index
    %c0_1 = arith.constant 0 : index
    %3 = vector.load %arg24[%c0, %c0_1] : memref<8x32xf32, #tpu.memory_space<vmem>>, vector<8x32xf32>
    %c0_2 = arith.constant 0 : index
    %c0_3 = arith.constant 0 : index
    %c0_4 = arith.constant 0 : index
    %4 = vector.load %arg7[%c0_2, %c0_3, %c0_4] : memref<1x1x32xf32, #tpu.memory_space<vmem>>, vector<1x1x32xf32>
    %5 = vector.shape_cast %4 : vector<1x1x32xf32> to vector<1x32xf32>
    %c0_5 = arith.constant 0 : index
    %c0_6 = arith.constant 0 : index
    %c0_7 = arith.constant 0 : index
    %6 = vector.load %arg8[%c0_5, %c0_6, %c0_7] : memref<1x1x32xf32, #tpu.memory_space<vmem>>, vector<1x1x32xf32>
    %7 = vector.shape_cast %6 : vector<1x1x32xf32> to vector<1x32xf32>
    %cst = arith.constant dense<0.000000e+00> : vector<8xf32>
    %8 = vector.multi_reduction <add>, %3, %cst [1] : vector<8x32xf32> to vector<8xf32>
    %9 = vector.shape_cast %8 : vector<8xf32> to vector<8x1xf32>
    %cst_8 = arith.constant 3.200000e+01 : f32
    %10 = vector.broadcast %cst_8 : f32 to vector<8x1xf32>
    %11 = arith.divf %9, %10 : vector<8x1xf32>
    %12 = vector.broadcast %11 : vector<8x1xf32> to vector<8x32xf32>
    %13 = arith.subf %3, %12 : vector<8x32xf32>
    %14 = arith.mulf %13, %13 : vector<8x32xf32>
    %cst_9 = arith.constant dense<0.000000e+00> : vector<8xf32>
    %15 = vector.multi_reduction <add>, %14, %cst_9 [1] : vector<8x32xf32> to vector<8xf32>
    %16 = vector.shape_cast %15 : vector<8xf32> to vector<8x1xf32>
    %cst_10 = arith.constant 3.200000e+01 : f32
    %17 = vector.broadcast %cst_10 : f32 to vector<8x1xf32>
    %18 = arith.divf %16, %17 : vector<8x1xf32>
    %cst_11 = arith.constant 9.99999974E-6 : f32
    %19 = vector.broadcast %cst_11 : f32 to vector<8x1xf32>
    %20 = arith.addf %18, %19 : vector<8x1xf32>
    %21 = math.rsqrt %20 : vector<8x1xf32>
    %22 = vector.broadcast %21 : vector<8x1xf32> to vector<8x32xf32>
    %23 = arith.mulf %13, %22 : vector<8x32xf32>
    %24 = vector.broadcast %5 : vector<1x32xf32> to vector<8x32xf32>
    %25 = arith.mulf %23, %24 : vector<8x32xf32>
    %26 = vector.broadcast %7 : vector<1x32xf32> to vector<8x32xf32>
    %27 = arith.addf %25, %26 : vector<8x32xf32>
    %28 = arith.truncf %27 : vector<8x32xf32> to vector<8x32xbf16>
    %29 = vector.shape_cast %28 : vector<8x32xbf16> to vector<1x8x32xbf16>
    %30 = vector.broadcast %29 : vector<1x8x32xbf16> to vector<2x8x32xbf16>
    %c0_12 = arith.constant 0 : index
    %c0_13 = arith.constant 0 : index
    %c0_14 = arith.constant 0 : index
    %c0_15 = arith.constant 0 : index
    %31 = vector.load %arg9[%c0_12, %c0_13, %c0_14, %c0_15] : memref<1x2x32x48xbf16, #tpu.memory_space<vmem>>, vector<1x2x32x48xbf16>
    %32 = vector.shape_cast %31 : vector<1x2x32x48xbf16> to vector<2x32x48xbf16>
    "tpu.trace_start"() <{level = 10 : i32, message = "hsd,hde->hse"}> : () -> ()
    %cst_16 = arith.constant dense<0.000000e+00> : vector<2x8x48xf32>
    %33 = tpu.matmul %30, %32, %cst_16 {dimension_numbers = #tpu.dot_dimension_numbers<[2], [1], [1], [2], [0, 0, 0, 1, 1, 2], [0], [0]>} : vector<2x8x32xbf16>, vector<2x32x48xbf16>, vector<2x8x48xf32> -> vector<2x8x48xf32>
    "tpu.trace_stop"() : () -> ()
    %c0_17 = arith.constant 0 : index
    %c0_18 = arith.constant 0 : index
    %c0_19 = arith.constant 0 : index
    %c0_20 = arith.constant 0 : index
    %34 = vector.load %arg10[%c0_17, %c0_18, %c0_19, %c0_20] : memref<1x2x1x48xf32, #tpu.memory_space<vmem>>, vector<1x2x1x48xf32>
    %35 = vector.shape_cast %34 : vector<1x2x1x48xf32> to vector<2x1x48xf32>
    %36 = vector.broadcast %35 : vector<2x1x48xf32> to vector<2x8x48xf32>
    %37 = arith.addf %33, %36 : vector<2x8x48xf32>
    %38 = vector.extract_strided_slice %37 {offsets = [0, 0, 0], sizes = [2, 8, 16], strides = [1, 1, 1]} : vector<2x8x48xf32> to vector<2x8x16xf32>
    %39 = arith.truncf %38 : vector<2x8x16xf32> to vector<2x8x16xbf16>
    %40 = vector.extract_strided_slice %37 {offsets = [0, 0, 16], sizes = [2, 8, 16], strides = [1, 1, 1]} : vector<2x8x48xf32> to vector<2x8x16xf32>
    %41 = arith.truncf %40 : vector<2x8x16xf32> to vector<2x8x16xbf16>
    %42 = vector.extract_strided_slice %37 {offsets = [0, 0, 32], sizes = [2, 8, 16], strides = [1, 1, 1]} : vector<2x8x48xf32> to vector<2x8x16xf32>
    %43 = arith.truncf %42 : vector<2x8x16xf32> to vector<2x8x16xbf16>
    "tpu.trace_start"() <{level = 10 : i32, message = "hqd,hkd->hqk"}> : () -> ()
    %cst_21 = arith.constant dense<0.000000e+00> : vector<2x8x8xf32>
    %44 = tpu.matmul %39, %41, %cst_21 {dimension_numbers = #tpu.dot_dimension_numbers<[2], [2], [1], [1], [0, 0, 0, 1, 1, 1], [0], [0]>} : vector<2x8x16xbf16>, vector<2x8x16xbf16>, vector<2x8x8xf32> -> vector<2x8x8xf32>
    "tpu.trace_stop"() : () -> ()
    %cst_22 = arith.constant 2.500000e-01 : f32
    %45 = vector.broadcast %cst_22 : f32 to vector<2x8x8xf32>
    %46 = arith.mulf %44, %45 : vector<2x8x8xf32>
    %47 = tpu.iota {dimensions = array<i32: 2>} : vector<2x8x8xi32>
    %c5_i32 = arith.constant 5 : i32
    %48 = vector.broadcast %c5_i32 : i32 to vector<2x8x8xi32>
    %49 = arith.cmpi slt, %47, %48 : vector<2x8x8xi32>
    %cst_23 = arith.constant -1.000000e+30 : f32
    %50 = vector.broadcast %cst_23 : f32 to vector<2x8x8xf32>
    %51 = arith.select %49, %46, %50 : vector<2x8x8xi1>, vector<2x8x8xf32>
    %cst_24 = arith.constant dense<0xFF800000> : vector<2x8xf32>
    %52 = vector.multi_reduction <maximumf>, %51, %cst_24 [2] : vector<2x8x8xf32> to vector<2x8xf32>
    %53 = vector.shape_cast %52 : vector<2x8xf32> to vector<2x8x1xf32>
    %54 = vector.broadcast %53 : vector<2x8x1xf32> to vector<2x8x8xf32>
    %55 = arith.subf %51, %54 : vector<2x8x8xf32>
    %56 = math.exp %55 : vector<2x8x8xf32>
    %cst_25 = arith.constant dense<0.000000e+00> : vector<2x8xf32>
    %57 = vector.multi_reduction <add>, %56, %cst_25 [2] : vector<2x8x8xf32> to vector<2x8xf32>
    %58 = vector.shape_cast %57 : vector<2x8xf32> to vector<2x8x1xf32>
    %59 = tpu.reciprocal %58 {approx = true} : vector<2x8x1xf32> -> vector<2x8x1xf32>
    %60 = vector.broadcast %59 : vector<2x8x1xf32> to vector<2x8x8xf32>
    %61 = arith.mulf %56, %60 : vector<2x8x8xf32>
    %62 = arith.truncf %61 : vector<2x8x8xf32> to vector<2x8x8xbf16>
    "tpu.trace_start"() <{level = 10 : i32, message = "hqk,hkd->hqd"}> : () -> ()
    %cst_26 = arith.constant dense<0.000000e+00> : vector<2x8x16xf32>
    %63 = tpu.matmul %62, %43, %cst_26 {dimension_numbers = #tpu.dot_dimension_numbers<[2], [1], [1], [2], [0, 0, 0, 1, 1, 2], [0], [0]>} : vector<2x8x8xbf16>, vector<2x8x16xbf16>, vector<2x8x16xf32> -> vector<2x8x16xf32>
    "tpu.trace_stop"() : () -> ()
    %64 = arith.truncf %63 : vector<2x8x16xf32> to vector<2x8x16xbf16>
    %c0_27 = arith.constant 0 : index
    %c0_28 = arith.constant 0 : index
    %c0_29 = arith.constant 0 : index
    %c0_30 = arith.constant 0 : index
    %65 = vector.load %arg11[%c0_27, %c0_28, %c0_29, %c0_30] : memref<1x2x16x32xbf16, #tpu.memory_space<vmem>>, vector<1x2x16x32xbf16>
    %66 = vector.shape_cast %65 : vector<1x2x16x32xbf16> to vector<2x16x32xbf16>
    "tpu.trace_start"() <{level = 10 : i32, message = "hqd,hdo->hqo"}> : () -> ()
    %cst_31 = arith.constant dense<0.000000e+00> : vector<2x8x32xf32>
    %67 = tpu.matmul %64, %66, %cst_31 {dimension_numbers = #tpu.dot_dimension_numbers<[2], [1], [1], [2], [0, 0, 0, 1, 1, 2], [0], [0]>} : vector<2x8x16xbf16>, vector<2x16x32xbf16>, vector<2x8x32xf32> -> vector<2x8x32xf32>
    "tpu.trace_stop"() : () -> ()
    %cst_32 = arith.constant dense<0.000000e+00> : vector<8x32xf32>
    %68 = vector.multi_reduction <add>, %67, %cst_32 [0] : vector<2x8x32xf32> to vector<8x32xf32>
    %c0_33 = arith.constant 0 : index
    %c0_34 = arith.constant 0 : index
    %c0_35 = arith.constant 0 : index
    %69 = vector.load %arg12[%c0_33, %c0_34, %c0_35] : memref<1x1x32xf32, #tpu.memory_space<vmem>>, vector<1x1x32xf32>
    %70 = vector.shape_cast %69 : vector<1x1x32xf32> to vector<1x32xf32>
    %71 = vector.broadcast %70 : vector<1x32xf32> to vector<8x32xf32>
    %72 = arith.addf %68, %71 : vector<8x32xf32>
    %73 = arith.addf %72, %3 : vector<8x32xf32>
    %c0_36 = arith.constant 0 : index
    %c0_37 = arith.constant 0 : index
    %c0_38 = arith.constant 0 : index
    %74 = vector.load %arg13[%c0_36, %c0_37, %c0_38] : memref<1x1x32xf32, #tpu.memory_space<vmem>>, vector<1x1x32xf32>
    %75 = vector.shape_cast %74 : vector<1x1x32xf32> to vector<1x32xf32>
    %c0_39 = arith.constant 0 : index
    %c0_40 = arith.constant 0 : index
    %c0_41 = arith.constant 0 : index
    %76 = vector.load %arg14[%c0_39, %c0_40, %c0_41] : memref<1x1x32xf32, #tpu.memory_space<vmem>>, vector<1x1x32xf32>
    %77 = vector.shape_cast %76 : vector<1x1x32xf32> to vector<1x32xf32>
    %cst_42 = arith.constant dense<0.000000e+00> : vector<8xf32>
    %78 = vector.multi_reduction <add>, %73, %cst_42 [1] : vector<8x32xf32> to vector<8xf32>
    %79 = vector.shape_cast %78 : vector<8xf32> to vector<8x1xf32>
    %cst_43 = arith.constant 3.200000e+01 : f32
    %80 = vector.broadcast %cst_43 : f32 to vector<8x1xf32>
    %81 = arith.divf %79, %80 : vector<8x1xf32>
    %82 = vector.broadcast %81 : vector<8x1xf32> to vector<8x32xf32>
    %83 = arith.subf %73, %82 : vector<8x32xf32>
    %84 = arith.mulf %83, %83 : vector<8x32xf32>
    %cst_44 = arith.constant dense<0.000000e+00> : vector<8xf32>
    %85 = vector.multi_reduction <add>, %84, %cst_44 [1] : vector<8x32xf32> to vector<8xf32>
    %86 = vector.shape_cast %85 : vector<8xf32> to vector<8x1xf32>
    %cst_45 = arith.constant 3.200000e+01 : f32
    %87 = vector.broadcast %cst_45 : f32 to vector<8x1xf32>
    %88 = arith.divf %86, %87 : vector<8x1xf32>
    %cst_46 = arith.constant 9.99999974E-6 : f32
    %89 = vector.broadcast %cst_46 : f32 to vector<8x1xf32>
    %90 = arith.addf %88, %89 : vector<8x1xf32>
    %91 = math.rsqrt %90 : vector<8x1xf32>
    %92 = vector.broadcast %91 : vector<8x1xf32> to vector<8x32xf32>
    %93 = arith.mulf %83, %92 : vector<8x32xf32>
    %94 = vector.broadcast %75 : vector<1x32xf32> to vector<8x32xf32>
    %95 = arith.mulf %93, %94 : vector<8x32xf32>
    %96 = vector.broadcast %77 : vector<1x32xf32> to vector<8x32xf32>
    %97 = arith.addf %95, %96 : vector<8x32xf32>
    %98 = arith.truncf %97 : vector<8x32xf32> to vector<8x32xbf16>
    %c0_47 = arith.constant 0 : index
    %c0_48 = arith.constant 0 : index
    %c0_49 = arith.constant 0 : index
    %99 = vector.load %arg15[%c0_47, %c0_48, %c0_49] : memref<1x32x64xbf16, #tpu.memory_space<vmem>>, vector<1x32x64xbf16>
    %100 = vector.shape_cast %99 : vector<1x32x64xbf16> to vector<32x64xbf16>
    %cst_50 = arith.constant dense<0.000000e+00> : vector<8x64xf32>
    %101 = tpu.matmul %98, %100, %cst_50 {dimension_numbers = #tpu.dot_dimension_numbers<[1], [0], [0], [1], [0, 0, 1, 1], [], []>} : vector<8x32xbf16>, vector<32x64xbf16>, vector<8x64xf32> -> vector<8x64xf32>
    %c0_51 = arith.constant 0 : index
    %c0_52 = arith.constant 0 : index
    %c0_53 = arith.constant 0 : index
    %102 = vector.load %arg16[%c0_51, %c0_52, %c0_53] : memref<1x1x64xf32, #tpu.memory_space<vmem>>, vector<1x1x64xf32>
    %103 = vector.shape_cast %102 : vector<1x1x64xf32> to vector<1x64xf32>
    %104 = vector.broadcast %103 : vector<1x64xf32> to vector<8x64xf32>
    %105 = arith.addf %101, %104 : vector<8x64xf32>
    %cst_54 = arith.constant 5.000000e-01 : f32
    %106 = vector.broadcast %cst_54 : f32 to vector<8x64xf32>
    %107 = arith.mulf %106, %105 : vector<8x64xf32>
    %cst_55 = arith.constant 4.471500e-02 : f32
    %108 = vector.broadcast %cst_55 : f32 to vector<8x64xf32>
    %109 = arith.mulf %108, %105 : vector<8x64xf32>
    %110 = arith.mulf %109, %105 : vector<8x64xf32>
    %111 = arith.mulf %110, %105 : vector<8x64xf32>
    %112 = arith.addf %105, %111 : vector<8x64xf32>
    %cst_56 = arith.constant 0.797884583 : f32
    %113 = vector.broadcast %cst_56 : f32 to vector<8x64xf32>
    %114 = arith.mulf %113, %112 : vector<8x64xf32>
    %115 = math.tanh %114 : vector<8x64xf32>
    %cst_57 = arith.constant 1.000000e+00 : f32
    %116 = vector.broadcast %cst_57 : f32 to vector<8x64xf32>
    %117 = arith.addf %116, %115 : vector<8x64xf32>
    %118 = arith.mulf %107, %117 : vector<8x64xf32>
    %119 = arith.truncf %118 : vector<8x64xf32> to vector<8x64xbf16>
    %c0_58 = arith.constant 0 : index
    %c0_59 = arith.constant 0 : index
    %c0_60 = arith.constant 0 : index
    %120 = vector.load %arg17[%c0_58, %c0_59, %c0_60] : memref<1x64x32xbf16, #tpu.memory_space<vmem>>, vector<1x64x32xbf16>
    %121 = vector.shape_cast %120 : vector<1x64x32xbf16> to vector<64x32xbf16>
    %cst_61 = arith.constant dense<0.000000e+00> : vector<8x32xf32>
    %122 = tpu.matmul %119, %121, %cst_61 {dimension_numbers = #tpu.dot_dimension_numbers<[1], [0], [0], [1], [0, 0, 1, 1], [], []>} : vector<8x64xbf16>, vector<64x32xbf16>, vector<8x32xf32> -> vector<8x32xf32>
    %c0_62 = arith.constant 0 : index
    %c0_63 = arith.constant 0 : index
    %c0_64 = arith.constant 0 : index
    %123 = vector.load %arg18[%c0_62, %c0_63, %c0_64] : memref<1x1x32xf32, #tpu.memory_space<vmem>>, vector<1x1x32xf32>
    %124 = vector.shape_cast %123 : vector<1x1x32xf32> to vector<1x32xf32>
    %125 = vector.broadcast %124 : vector<1x32xf32> to vector<8x32xf32>
    %126 = arith.addf %122, %125 : vector<8x32xf32>
    %127 = arith.addf %126, %73 : vector<8x32xf32>
    %c0_65 = arith.constant 0 : index
    %c0_66 = arith.constant 0 : index
    %128 = vector.load %arg24[%c0_65, %c0_66] : memref<8x32xf32, #tpu.memory_space<vmem>>, vector<8x32xf32>
    tpu.vector_store %arg24[%c0_65, %c0_66], %127 {strides = array<i32>} : memref<8x32xf32, #tpu.memory_space<vmem>>, vector<8x32xf32>,
    %c1_i32 = arith.constant 1 : i32
    %129 = arith.cmpi eq, %arg1, %c1_i32 : i32
    %130 = arith.extui %129 : i1 to i32
    %c0_i32_67 = arith.constant 0 : i32
    %131 = arith.cmpi ne, %130, %c0_i32_67 : i32
    scf.if %131 {
      %132 = vector.extract_strided_slice %127 {offsets = [0, 0], sizes = [1, 32], strides = [1, 1]} : vector<8x32xf32> to vector<1x32xf32>
      %c0_68 = arith.constant 0 : index
      %c0_69 = arith.constant 0 : index
      %133 = vector.load %arg19[%c0_68, %c0_69] : memref<1x32xf32, #tpu.memory_space<vmem>>, vector<1x32xf32>
      %c0_70 = arith.constant 0 : index
      %c0_71 = arith.constant 0 : index
      %134 = vector.load %arg20[%c0_70, %c0_71] : memref<1x32xf32, #tpu.memory_space<vmem>>, vector<1x32xf32>
      %cst_72 = arith.constant dense<0.000000e+00> : vector<1xf32>
      %135 = vector.multi_reduction <add>, %132, %cst_72 [1] : vector<1x32xf32> to vector<1xf32>
      %136 = vector.shape_cast %135 : vector<1xf32> to vector<1x1xf32>
      %cst_73 = arith.constant 3.200000e+01 : f32
      %137 = vector.broadcast %cst_73 : f32 to vector<1x1xf32>
      %138 = arith.divf %136, %137 : vector<1x1xf32>
      %139 = vector.broadcast %138 : vector<1x1xf32> to vector<1x32xf32>
      %140 = arith.subf %132, %139 : vector<1x32xf32>
      %141 = arith.mulf %140, %140 : vector<1x32xf32>
      %cst_74 = arith.constant dense<0.000000e+00> : vector<1xf32>
      %142 = vector.multi_reduction <add>, %141, %cst_74 [1] : vector<1x32xf32> to vector<1xf32>
      %143 = vector.shape_cast %142 : vector<1xf32> to vector<1x1xf32>
      %cst_75 = arith.constant 3.200000e+01 : f32
      %144 = vector.broadcast %cst_75 : f32 to vector<1x1xf32>
      %145 = arith.divf %143, %144 : vector<1x1xf32>
      %cst_76 = arith.constant 9.99999974E-6 : f32
      %146 = vector.broadcast %cst_76 : f32 to vector<1x1xf32>
      %147 = arith.addf %145, %146 : vector<1x1xf32>
      %148 = math.rsqrt %147 : vector<1x1xf32>
      %149 = vector.broadcast %148 : vector<1x1xf32> to vector<1x32xf32>
      %150 = arith.mulf %140, %149 : vector<1x32xf32>
      %151 = arith.mulf %150, %133 : vector<1x32xf32>
      %152 = arith.addf %151, %134 : vector<1x32xf32>
      %c0_77 = arith.constant 0 : index
      %c0_78 = arith.constant 0 : index
      %153 = vector.load %arg19[%c0_77, %c0_78] : memref<1x32xf32, #tpu.memory_space<vmem>>, vector<1x32xf32>
      %c0_79 = arith.constant 0 : index
      %c0_80 = arith.constant 0 : index
      %154 = vector.load %arg20[%c0_79, %c0_80] : memref<1x32xf32, #tpu.memory_space<vmem>>, vector<1x32xf32>
      %cst_81 = arith.constant dense<0.000000e+00> : vector<1xf32>
      %155 = vector.multi_reduction <add>, %152, %cst_81 [1] : vector<1x32xf32> to vector<1xf32>
      %156 = vector.shape_cast %155 : vector<1xf32> to vector<1x1xf32>
      %cst_82 = arith.constant 3.200000e+01 : f32
      %157 = vector.broadcast %cst_82 : f32 to vector<1x1xf32>
      %158 = arith.divf %156, %157 : vector<1x1xf32>
      %159 = vector.broadcast %158 : vector<1x1xf32> to vector<1x32xf32>
      %160 = arith.subf %152, %159 : vector<1x32xf32>
      %161 = arith.mulf %160, %160 : vector<1x32xf32>
      %cst_83 = arith.constant dense<0.000000e+00> : vector<1xf32>
      %162 = vector.multi_reduction <add>, %161, %cst_83 [1] : vector<1x32xf32> to vector<1xf32>
      %163 = vector.shape_cast %162 : vector<1xf32> to vector<1x1xf32>
      %cst_84 = arith.constant 3.200000e+01 : f32
      %164 = vector.broadcast %cst_84 : f32 to vector<1x1xf32>
      %165 = arith.divf %163, %164 : vector<1x1xf32>
      %cst_85 = arith.constant 9.99999974E-6 : f32
      %166 = vector.broadcast %cst_85 : f32 to vector<1x1xf32>
      %167 = arith.addf %165, %166 : vector<1x1xf32>
      %168 = math.rsqrt %167 : vector<1x1xf32>
      %169 = vector.broadcast %168 : vector<1x1xf32> to vector<1x32xf32>
      %170 = arith.mulf %160, %169 : vector<1x32xf32>
      %171 = arith.mulf %170, %153 : vector<1x32xf32>
      %172 = arith.addf %171, %154 : vector<1x32xf32>
      %173 = arith.truncf %172 : vector<1x32xf32> to vector<1x32xbf16>
      %c0_86 = arith.constant 0 : index
      %c0_87 = arith.constant 0 : index
      %174 = vector.load %arg21[%c0_86, %c0_87] : memref<32x128xbf16, #tpu.memory_space<vmem>>, vector<32x128xbf16>
      %cst_88 = arith.constant dense<0.000000e+00> : vector<1x128xf32>
      %175 = tpu.matmul %173, %174, %cst_88 {dimension_numbers = #tpu.dot_dimension_numbers<[1], [0], [0], [1], [0, 0, 1, 1], [], []>} : vector<1x32xbf16>, vector<32x128xbf16>, vector<1x128xf32> -> vector<1x128xf32>
      %c0_89 = arith.constant 0 : index
      %c0_90 = arith.constant 0 : index
      %176 = vector.load %arg22[%c0_89, %c0_90] : memref<1x128xf32, #tpu.memory_space<vmem>>, vector<1x128xf32>
      %177 = arith.addf %175, %176 : vector<1x128xf32>
      %c0_91 = arith.constant 0 : index
      %c0_92 = arith.constant 0 : index
      %c0_93 = arith.constant 0 : index
      %178 = vector.load %arg23[%c0_91, %c0_92, %c0_93] : memref<1x1x128xf32, #tpu.memory_space<vmem>>, vector<1x1x128xf32>
      %179 = vector.shape_cast %178 : vector<1x1x128xf32> to vector<1x128xf32>
      %180 = vector.shape_cast %177 : vector<1x128xf32> to vector<1x1x128xf32>
      tpu.vector_store %arg23[%c0_91, %c0_92, %c0_93], %180 {strides = array<i32>} : memref<1x1x128xf32, #tpu.memory_space<vmem>>, vector<1x1x128xf32>,
    } else {
    }
    return
  }
  func.func @transform_0(%arg0: i32, %arg1: i32) -> (i32, i32, i32) {
    %c0_i32 = arith.constant 0 : i32
    %c0_i32_0 = arith.constant 0 : i32
    %c0_i32_1 = arith.constant 0 : i32
    return %arg0, %c0_i32, %c0_i32_0 : i32, i32, i32
  }
  func.func @transform_1(%arg0: i32, %arg1: i32) -> (i32, i32) {
    %c0_i32 = arith.constant 0 : i32
    %c0_i32_0 = arith.constant 0 : i32
    %c0_i32_1 = arith.constant 0 : i32
    return %c0_i32, %c0_i32_0 : i32, i32
  }
  func.func @transform_2(%arg0: i32, %arg1: i32) -> (i32, i32) {
    %c0_i32 = arith.constant 0 : i32
    %c0_i32_0 = arith.constant 0 : i32
    %c0_i32_1 = arith.constant 0 : i32
    return %c0_i32, %c0_i32_0 : i32, i32
  }
  func.func @transform_3(%arg0: i32, %arg1: i32) -> (i32, i32) {
    %c0_i32 = arith.constant 0 : i32
    %c0_i32_0 = arith.constant 0 : i32
    %c0_i32_1 = arith.constant 0 : i32
    return %c0_i32, %c0_i32_0 : i32, i32
  }
  func.func @transform_4(%arg0: i32, %arg1: i32) -> (i32, i32) {
    %c0_i32 = arith.constant 0 : i32
    %c0_i32_0 = arith.constant 0 : i32
    %c0_i32_1 = arith.constant 0 : i32
    return %c0_i32, %c0_i32_0 : i32, i32
  }
  func.func @transform_5(%arg0: i32, %arg1: i32) -> (i32, i32, i32) {
    %c0_i32 = arith.constant 0 : i32
    %c0_i32_0 = arith.constant 0 : i32
    %c0_i32_1 = arith.constant 0 : i32
    return %arg1, %c0_i32, %c0_i32_0 : i32, i32, i32
  }
  func.func @transform_6(%arg0: i32, %arg1: i32) -> (i32, i32, i32) {
    %c0_i32 = arith.constant 0 : i32
    %c0_i32_0 = arith.constant 0 : i32
    %c0_i32_1 = arith.constant 0 : i32
    return %arg1, %c0_i32, %c0_i32_0 : i32, i32, i32
  }
  func.func @transform_7(%arg0: i32, %arg1: i32) -> (i32, i32, i32, i32) {
    %c0_i32 = arith.constant 0 : i32
    %c0_i32_0 = arith.constant 0 : i32
    %c0_i32_1 = arith.constant 0 : i32
    %c0_i32_2 = arith.constant 0 : i32
    return %arg1, %c0_i32, %c0_i32_0, %c0_i32_1 : i32, i32, i32, i32
  }
  func.func @transform_8(%arg0: i32, %arg1: i32) -> (i32, i32, i32, i32) {
    %c0_i32 = arith.constant 0 : i32
    %c0_i32_0 = arith.constant 0 : i32
    %c0_i32_1 = arith.constant 0 : i32
    %c0_i32_2 = arith.constant 0 : i32
    return %arg1, %c0_i32, %c0_i32_0, %c0_i32_1 : i32, i32, i32, i32
  }
  func.func @transform_9(%arg0: i32, %arg1: i32) -> (i32, i32, i32, i32) {
    %c0_i32 = arith.constant 0 : i32
    %c0_i32_0 = arith.constant 0 : i32
    %c0_i32_1 = arith.constant 0 : i32
    %c0_i32_2 = arith.constant 0 : i32
    return %arg1, %c0_i32, %c0_i32_0, %c0_i32_1 : i32, i32, i32, i32
  }
  func.func @transform_10(%arg0: i32, %arg1: i32) -> (i32, i32, i32) {
    %c0_i32 = arith.constant 0 : i32
    %c0_i32_0 = arith.constant 0 : i32
    %c0_i32_1 = arith.constant 0 : i32
    return %arg1, %c0_i32, %c0_i32_0 : i32, i32, i32
  }
  func.func @transform_11(%arg0: i32, %arg1: i32) -> (i32, i32, i32) {
    %c0_i32 = arith.constant 0 : i32
    %c0_i32_0 = arith.constant 0 : i32
    %c0_i32_1 = arith.constant 0 : i32
    return %arg1, %c0_i32, %c0_i32_0 : i32, i32, i32
  }
  func.func @transform_12(%arg0: i32, %arg1: i32) -> (i32, i32, i32) {
    %c0_i32 = arith.constant 0 : i32
    %c0_i32_0 = arith.constant 0 : i32
    %c0_i32_1 = arith.constant 0 : i32
    return %arg1, %c0_i32, %c0_i32_0 : i32, i32, i32
  }
  func.func @transform_13(%arg0: i32, %arg1: i32) -> (i32, i32, i32) {
    %c0_i32 = arith.constant 0 : i32
    %c0_i32_0 = arith.constant 0 : i32
    %c0_i32_1 = arith.constant 0 : i32
    return %arg1, %c0_i32, %c0_i32_0 : i32, i32, i32
  }
  func.func @transform_14(%arg0: i32, %arg1: i32) -> (i32, i32, i32) {
    %c0_i32 = arith.constant 0 : i32
    %c0_i32_0 = arith.constant 0 : i32
    %c0_i32_1 = arith.constant 0 : i32
    return %arg1, %c0_i32, %c0_i32_0 : i32, i32, i32
  }
  func.func @transform_15(%arg0: i32, %arg1: i32) -> (i32, i32, i32) {
    %c0_i32 = arith.constant 0 : i32
    %c0_i32_0 = arith.constant 0 : i32
    %c0_i32_1 = arith.constant 0 : i32
    return %arg1, %c0_i32, %c0_i32_0 : i32, i32, i32
  }
  func.func @transform_16(%arg0: i32, %arg1: i32) -> (i32, i32, i32) {
    %c0_i32 = arith.constant 0 : i32
    %c0_i32_0 = arith.constant 0 : i32
    %c0_i32_1 = arith.constant 0 : i32
    return %arg1, %c0_i32, %c0_i32_0 : i32, i32, i32
  }
  func.func @transform_17(%arg0: i32, %arg1: i32) -> (i32, i32) {
    %c0_i32 = arith.constant 0 : i32
    %c0_i32_0 = arith.constant 0 : i32
    %c0_i32_1 = arith.constant 0 : i32
    return %c0_i32, %c0_i32_0 : i32, i32
  }
  func.func @transform_18(%arg0: i32, %arg1: i32) -> (i32, i32) {
    %c0_i32 = arith.constant 0 : i32
    %c0_i32_0 = arith.constant 0 : i32
    %c0_i32_1 = arith.constant 0 : i32
    return %c0_i32, %c0_i32_0 : i32, i32
  }
  func.func @transform_19(%arg0: i32, %arg1: i32) -> (i32, i32) {
    %c0_i32 = arith.constant 0 : i32
    %c0_i32_0 = arith.constant 0 : i32
    %c0_i32_1 = arith.constant 0 : i32
    return %c0_i32, %c0_i32_0 : i32, i32
  }
  func.func @transform_20(%arg0: i32, %arg1: i32) -> (i32, i32) {
    %c0_i32 = arith.constant 0 : i32
    %c0_i32_0 = arith.constant 0 : i32
    %c0_i32_1 = arith.constant 0 : i32
    return %c0_i32, %c0_i32_0 : i32, i32
  }
  func.func @transform_21(%arg0: i32, %arg1: i32) -> (i32, i32, i32) {
    %c0_i32 = arith.constant 0 : i32
    %c0_i32_0 = arith.constant 0 : i32
    %c0_i32_1 = arith.constant 0 : i32
    return %arg0, %c0_i32, %c0_i32_0 : i32, i32, i32
  }
}

</mosaic_0001>

<llo_original>
// kernel: blip_for_image_classification.1
$region0: #{blip_for_image_classification.1}
  #allocation0 [shape = 'u32[]', space=smem, size = 0x4, offset = 0x4, fixed_abs, tag = 'smem constant byte address 0x4 - core index']
  #allocation1 [shape = 'u32[144,128]{1,0:T(1,128)}', space=vmem, size = 0x12000, scoped, tag = 'internal scratch']
  #allocation2 [shape = 'f32[8,32]{1,0:T(8,128)}', space=vmem, size = 0x1000, scoped, tag = 'scratch operand']
  %s0 = inlined_call_operand.vmem [shape: bf16[2,4,192], index: 0, kind: input, shape index: {}]
  %s1 = inlined_call_operand.vmem [shape: bf16[192,32], index: 1, kind: input, shape index: {}]
  %s2 = inlined_call_operand.vmem [shape: f32[1,32], index: 2, kind: input, shape index: {}]
  %s3 = inlined_call_operand.vmem [shape: f32[1,32], index: 3, kind: input, shape index: {}]
  %s4 = inlined_call_operand.vmem [shape: f32[5,32], index: 4, kind: input, shape index: {}]
  %s5 = inlined_call_operand.vmem [shape: f32[2,1,32], index: 5, kind: input, shape index: {}]
  %s6 = inlined_call_operand.vmem [shape: f32[2,1,32], index: 6, kind: input, shape index: {}]
  %s7 = inlined_call_operand.vmem [shape: bf16[2,2,32,48], index: 7, kind: input, shape index: {}]
  %s8 = inlined_call_operand.vmem [shape: f32[2,2,1,48], index: 8, kind: input, shape index: {}]
  %s9 = inlined_call_operand.vmem [shape: bf16[2,2,16,32], index: 9, kind: input, shape index: {}]
  %s10 = inlined_call_operand.vmem [shape: f32[2,1,32], index: 10, kind: input, shape index: {}]
  %s11 = inlined_call_operand.vmem [shape: f32[2,1,32], index: 11, kind: input, shape index: {}]
  %s12 = inlined_call_operand.vmem [shape: f32[2,1,32], index: 12, kind: input, shape index: {}]
  %s13 = inlined_call_operand.vmem [shape: bf16[2,32,64], index: 13, kind: input, shape index: {}]
  %s14 = inlined_call_operand.vmem [shape: f32[2,1,64], index: 14, kind: input, shape index: {}]
  %s15 = inlined_call_operand.vmem [shape: bf16[2,64,32], index: 15, kind: input, shape index: {}]
  %s16 = inlined_call_operand.vmem [shape: f32[2,1,32], index: 16, kind: input, shape index: {}]
  %s17 = inlined_call_operand.vmem [shape: f32[1,32], index: 17, kind: input, shape index: {}]
  %s18 = inlined_call_operand.vmem [shape: f32[1,32], index: 18, kind: input, shape index: {}]
  %s19 = inlined_call_operand.vmem [shape: bf16[32,128], index: 19, kind: input, shape index: {}]
  %s20 = inlined_call_operand.vmem [shape: f32[1,128], index: 20, kind: input, shape index: {}]
  %s21 = inlined_call_operand.hbm [shape: f32[2,1,128], index: 21, kind: output, shape index: {}]
  %s22 = sld [smem:[#allocation0]]
  $region125: #{blip_for_image_classification.1} parent=0
    _
  %s24 = ssub.s32 1, %s22
  %s25 = scalar_select 0, %s24, %s22
  $region1: #{blip_for_image_classification.1} parent=0
    #allocation3 [shape = 'u8[1024]{0}', space=vmem, size = 0x400, scoped, tag = 'output window, operand 0']
    #allocation4 [shape = 's32[2]{0}', space=sflag, size = 0x8, scoped, tag = 'scoped memory for blip_for_image_classification.1']
    %26 = vsyncpa [#allocation4], 0
    %s27 = scalar_lea.sflag [#allocation4], 1
    %28 = vsyncpa %s27, 0
    loop: start=0, step=1, limit=6
    $region2: #{blip_for_image_classification.1} parent=1 // loop_pre_header
      _
    $region3: #{blip_for_image_classification.1} parent=1 // loop_header
      %s30 = sphi 0, %s34
      %p31 = scmp.ge.s32.totalorder %s30, 6
      %s37 = sphi 0, %s49
      %s38 = sphi 0, %s45
      %s39 = sphi 0, %s37
      %s40 = sphi 0, %s38
      %s41 = sphi 0, %s39
      %s42 = sphi 0, %s40
      %s52 = sphi 0, %s54
      %s55 = sphi 0, %s52
      %s56 = sphi 0, %s55
      %s72 = sphi 0, %s56
      %s76 = sphi 0, %s76
      %s78 = sphi 0, %s76
      %s79 = sphi 0, %s78
      %s93 = sphi 0, %s79
      %s97 = sphi 0, %s97
      %s99 = sphi 0, %s97
      %s100 = sphi 0, %s99
      %s114 = sphi 0, %s100
      %s118 = sphi 0, %s118
      %s120 = sphi 0, %s118
      %s121 = sphi 0, %s120
      %s135 = sphi 0, %s121
      %s139 = sphi 0, %s139
      %s141 = sphi 0, %s139
      %s142 = sphi 0, %s141
      %s156 = sphi 0, %s142
      %s162 = sphi 0, %s164
      %s165 = sphi 0, %s162
      %s166 = sphi 0, %s165
      %s182 = sphi 0, %s166
      %s188 = sphi 0, %s190
      %s191 = sphi 0, %s188
      %s192 = sphi 0, %s191
      %s208 = sphi 0, %s192
      %s214 = sphi 0, %s216
      %s217 = sphi 0, %s214
      %s218 = sphi 0, %s217
      %s234 = sphi 0, %s218
      %s240 = sphi 0, %s242
      %s243 = sphi 0, %s240
      %s244 = sphi 0, %s243
      %s260 = sphi 0, %s244
      %s266 = sphi 0, %s268
      %s269 = sphi 0, %s266
      %s270 = sphi 0, %s269
      %s286 = sphi 0, %s270
      %s292 = sphi 0, %s294
      %s295 = sphi 0, %s292
      %s296 = sphi 0, %s295
      %s312 = sphi 0, %s296
      %s318 = sphi 0, %s320
      %s321 = sphi 0, %s318
      %s322 = sphi 0, %s321
      %s338 = sphi 0, %s322
      %s344 = sphi 0, %s346
      %s347 = sphi 0, %s344
      %s348 = sphi 0, %s347
      %s364 = sphi 0, %s348
      %s370 = sphi 0, %s372
      %s373 = sphi 0, %s370
      %s374 = sphi 0, %s373
      %s390 = sphi 0, %s374
      %s396 = sphi 0, %s398
      %s399 = sphi 0, %s396
      %s400 = sphi 0, %s399
      %s416 = sphi 0, %s400
      %s422 = sphi 0, %s424
      %s425 = sphi 0, %s422
      %s426 = sphi 0, %s425
      %s442 = sphi 0, %s426
      %s448 = sphi 0, %s450
      %s451 = sphi 0, %s448
      %s452 = sphi 0, %s451
      %s468 = sphi 0, %s452
      %s472 = sphi 0, %s472
      %s474 = sphi 0, %s472
      %s475 = sphi 0, %s474
      %s489 = sphi 0, %s475
      %s493 = sphi 0, %s493
      %s495 = sphi 0, %s493
      %s496 = sphi 0, %s495
      %s510 = sphi 0, %s496
      %s514 = sphi 0, %s514
      %s516 = sphi 0, %s514
      %s517 = sphi 0, %s516
      %s531 = sphi 0, %s517
      %s535 = sphi 0, %s535
      %s537 = sphi 0, %s535
      %s538 = sphi 0, %s537
      %s552 = sphi 0, %s538
      %s558 = sphi 0, %s560
      %s561 = sphi 0, %s558
      %s562 = sphi 0, %s561
      %s578 = sphi 0, %s562
    $region4: #{blip_for_image_classification.1} parent=1 // loop_header_branch
      %33 = sbr.rel (%p31) target = $region8
    $region5: #{blip_for_image_classification.1} parent=1 // loop_body
      %s35 = ssub.s32 %s30, 1
      %s36 = ssub.s32 %s30, 2
      %s43 = sadd.s32 1, %s38
      %p44 = scmp.ge.s32.totalorder %s43, 2
      %s45 = scalar_select %p44, 0, %s43
      %s46 = sadd.s32 1, %s37
      %s47 = scalar_select %p44, %s46, %s37
      %p48 = scmp.ge.s32.totalorder %s47, 2
      %s49 = scalar_select %p48, 0, %s47
      %s50 = ssub.s32 %s37, %s49
      %p51 = scmp.eq.s32.totalorder %s50, 0
      %s53 = sadd.s32 %s52, 1
      %s54 = scalar_select %p51, %s52, %s53
      %p57 = pneg %p51
      %p58 = scmp.eq.s32.totalorder %s30, 3
      %p59 = por %p57, %p58
      %p60 = scmp.ne.s32.totalorder %s52, %s55
      %p61 = scmp.eq.s32.totalorder %s30, 0
      %p62 = por %p60, %p61
      %p63 = scmp.ne.s32.totalorder %s52, %s55
      %p64 = scmp.eq.s32.totalorder %s35, 3
      %p65 = por %p63, %p64
      %p66 = scmp.ne.s32.totalorder %s55, %s56
      %p67 = scmp.eq.s32.totalorder %s35, 0
      %p68 = por %p66, %p67
      %p69 = scmp.ne.s32.totalorder %s55, %s56
      %p70 = scmp.eq.s32.totalorder %s36, 3
      %p71 = por %p69, %p70
      %p73 = scmp.ne.s32.totalorder %s56, %s72
      %p74 = scmp.eq.s32.totalorder %s36, 0
      %p75 = por %p73, %p74
      %s77 = sadd.s32 %s76, 1
      %p80 = scmp.eq.s32.totalorder %s30, 3
      %p81 = scmp.ne.s32.totalorder %s76, %s78
      %p82 = scmp.eq.s32.totalorder %s30, 0
      %p83 = por %p81, %p82
      %p84 = scmp.ne.s32.totalorder %s76, %s78
      %p85 = scmp.eq.s32.totalorder %s35, 3
      %p86 = por %p84, %p85
      %p87 = scmp.ne.s32.totalorder %s78, %s79
      %p88 = scmp.eq.s32.totalorder %s35, 0
      %p89 = por %p87, %p88
      %p90 = scmp.ne.s32.totalorder %s78, %s79
      %p91 = scmp.eq.s32.totalorder %s36, 3
      %p92 = por %p90, %p91
      %p94 = scmp.ne.s32.totalorder %s79, %s93
      %p95 = scmp.eq.s32.totalorder %s36, 0
      %p96 = por %p94, %p95
      %s98 = sadd.s32 %s97, 1
      %p101 = scmp.eq.s32.totalorder %s30, 3
      %p102 = scmp.ne.s32.totalorder %s97, %s99
      %p103 = scmp.eq.s32.totalorder %s30, 0
      %p104 = por %p102, %p103
      %p105 = scmp.ne.s32.totalorder %s97, %s99
      %p106 = scmp.eq.s32.totalorder %s35, 3
      %p107 = por %p105, %p106
      %p108 = scmp.ne.s32.totalorder %s99, %s100
      %p109 = scmp.eq.s32.totalorder %s35, 0
      %p110 = por %p108, %p109
      %p111 = scmp.ne.s32.totalorder %s99, %s100
      %p112 = scmp.eq.s32.totalorder %s36, 3
      %p113 = por %p111, %p112
      %p115 = scmp.ne.s32.totalorder %s100, %s114
      %p116 = scmp.eq.s32.totalorder %s36, 0
      %p117 = por %p115, %p116
      %s119 = sadd.s32 %s118, 1
      %p122 = scmp.eq.s32.totalorder %s30, 3
      %p123 = scmp.ne.s32.totalorder %s118, %s120
      %p124 = scmp.eq.s32.totalorder %s30, 0
      %p125 = por %p123, %p124
      %p126 = scmp.ne.s32.totalorder %s118, %s120
      %p127 = scmp.eq.s32.totalorder %s35, 3
      %p128 = por %p126, %p127
      %p129 = scmp.ne.s32.totalorder %s120, %s121
      %p130 = scmp.eq.s32.totalorder %s35, 0
      %p131 = por %p129, %p130
      %p132 = scmp.ne.s32.totalorder %s120, %s121
      %p133 = scmp.eq.s32.totalorder %s36, 3
      %p134 = por %p132, %p133
      %p136 = scmp.ne.s32.totalorder %s121, %s135
      %p137 = scmp.eq.s32.totalorder %s36, 0
      %p138 = por %p136, %p137
      %s140 = sadd.s32 %s139, 1
      %p143 = scmp.eq.s32.totalorder %s30, 3
      %p144 = scmp.ne.s32.totalorder %s139, %s141
      %p145 = scmp.eq.s32.totalorder %s30, 0
      %p146 = por %p144, %p145
      %p147 = scmp.ne.s32.totalorder %s139, %s141
      %p148 = scmp.eq.s32.totalorder %s35, 3
      %p149 = por %p147, %p148
      %p150 = scmp.ne.s32.totalorder %s141, %s142
      %p151 = scmp.eq.s32.totalorder %s35, 0
      %p152 = por %p150, %p151
      %p153 = scmp.ne.s32.totalorder %s141, %s142
      %p154 = scmp.eq.s32.totalorder %s36, 3
      %p155 = por %p153, %p154
      %p157 = scmp.ne.s32.totalorder %s142, %s156
      %p158 = scmp.eq.s32.totalorder %s36, 0
      %p159 = por %p157, %p158
      %s160 = ssub.s32 %s38, %s45
      %p161 = scmp.eq.s32.totalorder %s160, 0
      %s163 = sadd.s32 %s162, 1
      %s164 = scalar_select %p161, %s162, %s163
      %p167 = pneg %p161
      %p168 = scmp.eq.s32.totalorder %s30, 3
      %p169 = por %p167, %p168
      %p170 = scmp.ne.s32.totalorder %s162, %s165
      %p171 = scmp.eq.s32.totalorder %s30, 0
      %p172 = por %p170, %p171
      %p173 = scmp.ne.s32.totalorder %s162, %s165
      %p174 = scmp.eq.s32.totalorder %s35, 3
      %p175 = por %p173, %p174
      %p176 = scmp.ne.s32.totalorder %s165, %s166
      %p177 = scmp.eq.s32.totalorder %s35, 0
      %p178 = por %p176, %p177
      %p179 = scmp.ne.s32.totalorder %s165, %s166
      %p180 = scmp.eq.s32.totalorder %s36, 3
      %p181 = por %p179, %p180
      %p183 = scmp.ne.s32.totalorder %s166, %s182
      %p184 = scmp.eq.s32.totalorder %s36, 0
      %p185 = por %p183, %p184
      %s186 = ssub.s32 %s38, %s45
      %p187 = scmp.eq.s32.totalorder %s186, 0
      %s189 = sadd.s32 %s188, 1
      %s190 = scalar_select %p187, %s188, %s189
      %p193 = pneg %p187
      %p194 = scmp.eq.s32.totalorder %s30, 3
      %p195 = por %p193, %p194
      %p196 = scmp.ne.s32.totalorder %s188, %s191
      %p197 = scmp.eq.s32.totalorder %s30, 0
      %p198 = por %p196, %p197
      %p199 = scmp.ne.s32.totalorder %s188, %s191
      %p200 = scmp.eq.s32.totalorder %s35, 3
      %p201 = por %p199, %p200
      %p202 = scmp.ne.s32.totalorder %s191, %s192
      %p203 = scmp.eq.s32.totalorder %s35, 0
      %p204 = por %p202, %p203
      %p205 = scmp.ne.s32.totalorder %s191, %s192
      %p206 = scmp.eq.s32.totalorder %s36, 3
      %p207 = por %p205, %p206
      %p209 = scmp.ne.s32.totalorder %s192, %s208
      %p210 = scmp.eq.s32.totalorder %s36, 0
      %p211 = por %p209, %p210
      %s212 = ssub.s32 %s38, %s45
      %p213 = scmp.eq.s32.totalorder %s212, 0
      %s215 = sadd.s32 %s214, 1
      %s216 = scalar_select %p213, %s214, %s215
      %p219 = pneg %p213
      %p220 = scmp.eq.s32.totalorder %s30, 3
      %p221 = por %p219, %p220
      %p222 = scmp.ne.s32.totalorder %s214, %s217
      %p223 = scmp.eq.s32.totalorder %s30, 0
      %p224 = por %p222, %p223
      %p225 = scmp.ne.s32.totalorder %s214, %s217
      %p226 = scmp.eq.s32.totalorder %s35, 3
      %p227 = por %p225, %p226
      %p228 = scmp.ne.s32.totalorder %s217, %s218
      %p229 = scmp.eq.s32.totalorder %s35, 0
      %p230 = por %p228, %p229
      %p231 = scmp.ne.s32.totalorder %s217, %s218
      %p232 = scmp.eq.s32.totalorder %s36, 3
      %p233 = por %p231, %p232
      %p235 = scmp.ne.s32.totalorder %s218, %s234
      %p236 = scmp.eq.s32.totalorder %s36, 0
      %p237 = por %p235, %p236
      %s238 = ssub.s32 %s38, %s45
      %p239 = scmp.eq.s32.totalorder %s238, 0
      %s241 = sadd.s32 %s240, 1
      %s242 = scalar_select %p239, %s240, %s241
      %p245 = pneg %p239
      %p246 = scmp.eq.s32.totalorder %s30, 3
      %p247 = por %p245, %p246
      %p248 = scmp.ne.s32.totalorder %s240, %s243
      %p249 = scmp.eq.s32.totalorder %s30, 0
      %p250 = por %p248, %p249
      %p251 = scmp.ne.s32.totalorder %s240, %s243
      %p252 = scmp.eq.s32.totalorder %s35, 3
      %p253 = por %p251, %p252
      %p254 = scmp.ne.s32.totalorder %s243, %s244
      %p255 = scmp.eq.s32.totalorder %s35, 0
      %p256 = por %p254, %p255
      %p257 = scmp.ne.s32.totalorder %s243, %s244
      %p258 = scmp.eq.s32.totalorder %s36, 3
      %p259 = por %p257, %p258
      %p261 = scmp.ne.s32.totalorder %s244, %s260
      %p262 = scmp.eq.s32.totalorder %s36, 0
      %p263 = por %p261, %p262
      %s264 = ssub.s32 %s38, %s45
      %p265 = scmp.eq.s32.totalorder %s264, 0
      %s267 = sadd.s32 %s266, 1
      %s268 = scalar_select %p265, %s266, %s267
      %p271 = pneg %p265
      %p272 = scmp.eq.s32.totalorder %s30, 3
      %p273 = por %p271, %p272
      %p274 = scmp.ne.s32.totalorder %s266, %s269
      %p275 = scmp.eq.s32.totalorder %s30, 0
      %p276 = por %p274, %p275
      %p277 = scmp.ne.s32.totalorder %s266, %s269
      %p278 = scmp.eq.s32.totalorder %s35, 3
      %p279 = por %p277, %p278
      %p280 = scmp.ne.s32.totalorder %s269, %s270
      %p281 = scmp.eq.s32.totalorder %s35, 0
      %p282 = por %p280, %p281
      %p283 = scmp.ne.s32.totalorder %s269, %s270
      %p284 = scmp.eq.s32.totalorder %s36, 3
      %p285 = por %p283, %p284
      %p287 = scmp.ne.s32.totalorder %s270, %s286
      %p288 = scmp.eq.s32.totalorder %s36, 0
      %p289 = por %p287, %p288
      %s290 = ssub.s32 %s38, %s45
      %p291 = scmp.eq.s32.totalorder %s290, 0
      %s293 = sadd.s32 %s292, 1
      %s294 = scalar_select %p291, %s292, %s293
      %p297 = pneg %p291
      %p298 = scmp.eq.s32.totalorder %s30, 3
      %p299 = por %p297, %p298
      %p300 = scmp.ne.s32.totalorder %s292, %s295
      %p301 = scmp.eq.s32.totalorder %s30, 0
      %p302 = por %p300, %p301
      %p303 = scmp.ne.s32.totalorder %s292, %s295
      %p304 = scmp.eq.s32.totalorder %s35, 3
      %p305 = por %p303, %p304
      %p306 = scmp.ne.s32.totalorder %s295, %s296
      %p307 = scmp.eq.s32.totalorder %s35, 0
      %p308 = por %p306, %p307
      %p309 = scmp.ne.s32.totalorder %s295, %s296
      %p310 = scmp.eq.s32.totalorder %s36, 3
      %p311 = por %p309, %p310
      %p313 = scmp.ne.s32.totalorder %s296, %s312
      %p314 = scmp.eq.s32.totalorder %s36, 0
      %p315 = por %p313, %p314
      %s316 = ssub.s32 %s38, %s45
      %p317 = scmp.eq.s32.totalorder %s316, 0
      %s319 = sadd.s32 %s318, 1
      %s320 = scalar_select %p317, %s318, %s319
      %p323 = pneg %p317
      %p324 = scmp.eq.s32.totalorder %s30, 3
      %p325 = por %p323, %p324
      %p326 = scmp.ne.s32.totalorder %s318, %s321
      %p327 = scmp.eq.s32.totalorder %s30, 0
      %p328 = por %p326, %p327
      %p329 = scmp.ne.s32.totalorder %s318, %s321
      %p330 = scmp.eq.s32.totalorder %s35, 3
      %p331 = por %p329, %p330
      %p332 = scmp.ne.s32.totalorder %s321, %s322
      %p333 = scmp.eq.s32.totalorder %s35, 0
      %p334 = por %p332, %p333
      %p335 = scmp.ne.s32.totalorder %s321, %s322
      %p336 = scmp.eq.s32.totalorder %s36, 3
      %p337 = por %p335, %p336
      %p339 = scmp.ne.s32.totalorder %s322, %s338
      %p340 = scmp.eq.s32.totalorder %s36, 0
      %p341 = por %p339, %p340
      %s342 = ssub.s32 %s38, %s45
      %p343 = scmp.eq.s32.totalorder %s342, 0
      %s345 = sadd.s32 %s344, 1
      %s346 = scalar_select %p343, %s344, %s345
      %p349 = pneg %p343
      %p350 = scmp.eq.s32.totalorder %s30, 3
      %p351 = por %p349, %p350
      %p352 = scmp.ne.s32.totalorder %s344, %s347
      %p353 = scmp.eq.s32.totalorder %s30, 0
      %p354 = por %p352, %p353
      %p355 = scmp.ne.s32.totalorder %s344, %s347
      %p356 = scmp.eq.s32.totalorder %s35, 3
      %p357 = por %p355, %p356
      %p358 = scmp.ne.s32.totalorder %s347, %s348
      %p359 = scmp.eq.s32.totalorder %s35, 0
      %p360 = por %p358, %p359
      %p361 = scmp.ne.s32.totalorder %s347, %s348
      %p362 = scmp.eq.s32.totalorder %s36, 3
      %p363 = por %p361, %p362
      %p365 = scmp.ne.s32.totalorder %s348, %s364
      %p366 = scmp.eq.s32.totalorder %s36, 0
      %p367 = por %p365, %p366
      %s368 = ssub.s32 %s38, %s45
      %p369 = scmp.eq.s32.totalorder %s368, 0
      %s371 = sadd.s32 %s370, 1
      %s372 = scalar_select %p369, %s370, %s371
      %p375 = pneg %p369
      %p376 = scmp.eq.s32.totalorder %s30, 3
      %p377 = por %p375, %p376
      %p378 = scmp.ne.s32.totalorder %s370, %s373
      %p379 = scmp.eq.s32.totalorder %s30, 0
      %p380 = por %p378, %p379
      %p381 = scmp.ne.s32.totalorder %s370, %s373
      %p382 = scmp.eq.s32.totalorder %s35, 3
      %p383 = por %p381, %p382
      %p384 = scmp.ne.s32.totalorder %s373, %s374
      %p385 = scmp.eq.s32.totalorder %s35, 0
      %p386 = por %p384, %p385
      %p387 = scmp.ne.s32.totalorder %s373, %s374
      %p388 = scmp.eq.s32.totalorder %s36, 3
      %p389 = por %p387, %p388
      %p391 = scmp.ne.s32.totalorder %s374, %s390
      %p392 = scmp.eq.s32.totalorder %s36, 0
      %p393 = por %p391, %p392
      %s394 = ssub.s32 %s38, %s45
      %p395 = scmp.eq.s32.totalorder %s394, 0
      %s397 = sadd.s32 %s396, 1
      %s398 = scalar_select %p395, %s396, %s397
      %p401 = pneg %p395
      %p402 = scmp.eq.s32.totalorder %s30, 3
      %p403 = por %p401, %p402
      %p404 = scmp.ne.s32.totalorder %s396, %s399
      %p405 = scmp.eq.s32.totalorder %s30, 0
      %p406 = por %p404, %p405
      %p407 = scmp.ne.s32.totalorder %s396, %s399
      %p408 = scmp.eq.s32.totalorder %s35, 3
      %p409 = por %p407, %p408
      %p410 = scmp.ne.s32.totalorder %s399, %s400
      %p411 = scmp.eq.s32.totalorder %s35, 0
      %p412 = por %p410, %p411
      %p413 = scmp.ne.s32.totalorder %s399, %s400
      %p414 = scmp.eq.s32.totalorder %s36, 3
      %p415 = por %p413, %p414
      %p417 = scmp.ne.s32.totalorder %s400, %s416
      %p418 = scmp.eq.s32.totalorder %s36, 0
      %p419 = por %p417, %p418
      %s420 = ssub.s32 %s38, %s45
      %p421 = scmp.eq.s32.totalorder %s420, 0
      %s423 = sadd.s32 %s422, 1
      %s424 = scalar_select %p421, %s422, %s423
      %p427 = pneg %p421
      %p428 = scmp.eq.s32.totalorder %s30, 3
      %p429 = por %p427, %p428
      %p430 = scmp.ne.s32.totalorder %s422, %s425
      %p431 = scmp.eq.s32.totalorder %s30, 0
      %p432 = por %p430, %p431
      %p433 = scmp.ne.s32.totalorder %s422, %s425
      %p434 = scmp.eq.s32.totalorder %s35, 3
      %p435 = por %p433, %p434
      %p436 = scmp.ne.s32.totalorder %s425, %s426
      %p437 = scmp.eq.s32.totalorder %s35, 0
      %p438 = por %p436, %p437
      %p439 = scmp.ne.s32.totalorder %s425, %s426
      %p440 = scmp.eq.s32.totalorder %s36, 3
      %p441 = por %p439, %p440
      %p443 = scmp.ne.s32.totalorder %s426, %s442
      %p444 = scmp.eq.s32.totalorder %s36, 0
      %p445 = por %p443, %p444
      %s446 = ssub.s32 %s38, %s45
      %p447 = scmp.eq.s32.totalorder %s446, 0
      %s449 = sadd.s32 %s448, 1
      %s450 = scalar_select %p447, %s448, %s449
      %p453 = pneg %p447
      %p454 = scmp.eq.s32.totalorder %s30, 3
      %p455 = por %p453, %p454
      %p456 = scmp.ne.s32.totalorder %s448, %s451
      %p457 = scmp.eq.s32.totalorder %s30, 0
      %p458 = por %p456, %p457
      %p459 = scmp.ne.s32.totalorder %s448, %s451
      %p460 = scmp.eq.s32.totalorder %s35, 3
      %p461 = por %p459, %p460
      %p462 = scmp.ne.s32.totalorder %s451, %s452
      %p463 = scmp.eq.s32.totalorder %s35, 0
      %p464 = por %p462, %p463
      %p465 = scmp.ne.s32.totalorder %s451, %s452
      %p466 = scmp.eq.s32.totalorder %s36, 3
      %p467 = por %p465, %p466
      %p469 = scmp.ne.s32.totalorder %s452, %s468
      %p470 = scmp.eq.s32.totalorder %s36, 0
      %p471 = por %p469, %p470
      %s473 = sadd.s32 %s472, 1
      %p476 = scmp.eq.s32.totalorder %s30, 3
      %p477 = scmp.ne.s32.totalorder %s472, %s474
      %p478 = scmp.eq.s32.totalorder %s30, 0
      %p479 = por %p477, %p478
      %p480 = scmp.ne.s32.totalorder %s472, %s474
      %p481 = scmp.eq.s32.totalorder %s35, 3
      %p482 = por %p480, %p481
      %p483 = scmp.ne.s32.totalorder %s474, %s475
      %p484 = scmp.eq.s32.totalorder %s35, 0
      %p485 = por %p483, %p484
      %p486 = scmp.ne.s32.totalorder %s474, %s475
      %p487 = scmp.eq.s32.totalorder %s36, 3
      %p488 = por %p486, %p487
      %p490 = scmp.ne.s32.totalorder %s475, %s489
      %p491 = scmp.eq.s32.totalorder %s36, 0
      %p492 = por %p490, %p491
      %s494 = sadd.s32 %s493, 1
      %p497 = scmp.eq.s32.totalorder %s30, 3
      %p498 = scmp.ne.s32.totalorder %s493, %s495
      %p499 = scmp.eq.s32.totalorder %s30, 0
      %p500 = por %p498, %p499
      %p501 = scmp.ne.s32.totalorder %s493, %s495
      %p502 = scmp.eq.s32.totalorder %s35, 3
      %p503 = por %p501, %p502
      %p504 = scmp.ne.s32.totalorder %s495, %s496
      %p505 = scmp.eq.s32.totalorder %s35, 0
      %p506 = por %p504, %p505
      %p507 = scmp.ne.s32.totalorder %s495, %s496
      %p508 = scmp.eq.s32.totalorder %s36, 3
      %p509 = por %p507, %p508
      %p511 = scmp.ne.s32.totalorder %s496, %s510
      %p512 = scmp.eq.s32.totalorder %s36, 0
      %p513 = por %p511, %p512
      %s515 = sadd.s32 %s514, 1
      %p518 = scmp.eq.s32.totalorder %s30, 3
      %p519 = scmp.ne.s32.totalorder %s514, %s516
      %p520 = scmp.eq.s32.totalorder %s30, 0
      %p521 = por %p519, %p520
      %p522 = scmp.ne.s32.totalorder %s514, %s516
      %p523 = scmp.eq.s32.totalorder %s35, 3
      %p524 = por %p522, %p523
      %p525 = scmp.ne.s32.totalorder %s516, %s517
      %p526 = scmp.eq.s32.totalorder %s35, 0
      %p527 = por %p525, %p526
      %p528 = scmp.ne.s32.totalorder %s516, %s517
      %p529 = scmp.eq.s32.totalorder %s36, 3
      %p530 = por %p528, %p529
      %p532 = scmp.ne.s32.totalorder %s517, %s531
      %p533 = scmp.eq.s32.totalorder %s36, 0
      %p534 = por %p532, %p533
      %s536 = sadd.s32 %s535, 1
      %p539 = scmp.eq.s32.totalorder %s30, 3
      %p540 = scmp.ne.s32.totalorder %s535, %s537
      %p541 = scmp.eq.s32.totalorder %s30, 0
      %p542 = por %p540, %p541
      %p543 = scmp.ne.s32.totalorder %s535, %s537
      %p544 = scmp.eq.s32.totalorder %s35, 3
      %p545 = por %p543, %p544
      %p546 = scmp.ne.s32.totalorder %s537, %s538
      %p547 = scmp.eq.s32.totalorder %s35, 0
      %p548 = por %p546, %p547
      %p549 = scmp.ne.s32.totalorder %s537, %s538
      %p550 = scmp.eq.s32.totalorder %s36, 3
      %p551 = por %p549, %p550
      %p553 = scmp.ne.s32.totalorder %s538, %s552
      %p554 = scmp.eq.s32.totalorder %s36, 0
      %p555 = por %p553, %p554
      %s556 = ssub.s32 %s37, %s49
      %p557 = scmp.eq.s32.totalorder %s556, 0
      %s559 = sadd.s32 %s558, 1
      %s560 = scalar_select %p557, %s558, %s559
      %p563 = pneg %p557
      %p564 = scmp.eq.s32.totalorder %s30, 3
      %p565 = por %p563, %p564
      %p566 = scmp.ne.s32.totalorder %s558, %s561
      %p567 = scmp.eq.s32.totalorder %s30, 0
      %p568 = por %p566, %p567
      %p569 = scmp.ne.s32.totalorder %s558, %s561
      %p570 = scmp.eq.s32.totalorder %s35, 3
      %p571 = por %p569, %p570
      %p572 = scmp.ne.s32.totalorder %s561, %s562
      %p573 = scmp.eq.s32.totalorder %s35, 0
      %p574 = por %p572, %p573
      %p575 = scmp.ne.s32.totalorder %s561, %s562
      %p576 = scmp.eq.s32.totalorder %s36, 3
      %p577 = por %p575, %p576
      %p579 = scmp.ne.s32.totalorder %s562, %s578
      %p580 = scmp.eq.s32.totalorder %s36, 0
      %p581 = por %p579, %p580
      %p582 = scmp.le.s32.totalorder 1, %s30
      %p583 = scmp.lt.s32.totalorder %s30, 5
      %p584 = pnand %p582, %p583
      %p585 = pneg %p584
      // Predicated region
      $region9: #{blip_for_image_classification.1} parent=5 // pred_check
        _
      $region10: #{blip_for_image_classification.1} parent=5 // pred_check_branch
        %587 = sbr.rel (%p584) target = $region12
      $region11: #{blip_for_image_classification.1} parent=5 // pred_region
        %s588 = ssub.s32 %s30, 1
        // Predicated region
        $region13: #{blip_for_image_classification.1} parent=11 // pred_check
          %p589 = pneg %p89
        $region14: #{blip_for_image_classification.1} parent=11 // pred_check_branch
          %591 = sbr.rel (%p589) target = $region16
        $region15: #{blip_for_image_classification.1} parent=11 // pred_region
          _
        $region16: #{blip_for_image_classification.1} parent=11 // pred_fallthru
          _
        // Predicated region
        $region17: #{blip_for_image_classification.1} parent=11 // pred_check
          %p592 = pneg %p110
        $region18: #{blip_for_image_classification.1} parent=11 // pred_check_branch
          %594 = sbr.rel (%p592) target = $region20
        $region19: #{blip_for_image_classification.1} parent=11 // pred_region
          _
        $region20: #{blip_for_image_classification.1} parent=11 // pred_fallthru
          _
        // Predicated region
        $region21: #{blip_for_image_classification.1} parent=11 // pred_check
          %p595 = pneg %p131
        $region22: #{blip_for_image_classification.1} parent=11 // pred_check_branch
          %597 = sbr.rel (%p595) target = $region24
        $region23: #{blip_for_image_classification.1} parent=11 // pred_region
          _
        $region24: #{blip_for_image_classification.1} parent=11 // pred_fallthru
          _
        // Predicated region
        $region25: #{blip_for_image_classification.1} parent=11 // pred_check
          %p598 = pneg %p152
        $region26: #{blip_for_image_classification.1} parent=11 // pred_check_branch
          %600 = sbr.rel (%p598) target = $region28
        $region27: #{blip_for_image_classification.1} parent=11 // pred_region
          _
        $region28: #{blip_for_image_classification.1} parent=11 // pred_fallthru
          _
        // Predicated region
        $region29: #{blip_for_image_classification.1} parent=11 // pred_check
          %p601 = pneg %p485
        $region30: #{blip_for_image_classification.1} parent=11 // pred_check_branch
          %603 = sbr.rel (%p601) target = $region32
        $region31: #{blip_for_image_classification.1} parent=11 // pred_region
          _
        $region32: #{blip_for_image_classification.1} parent=11 // pred_fallthru
          _
        // Predicated region
        $region33: #{blip_for_image_classification.1} parent=11 // pred_check
          %p604 = pneg %p506
        $region34: #{blip_for_image_classification.1} parent=11 // pred_check_branch
          %606 = sbr.rel (%p604) target = $region36
        $region35: #{blip_for_image_classification.1} parent=11 // pred_region
          _
        $region36: #{blip_for_image_classification.1} parent=11 // pred_fallthru
          _
        // Predicated region
        $region37: #{blip_for_image_classification.1} parent=11 // pred_check
          %p607 = pneg %p527
        $region38: #{blip_for_image_classification.1} parent=11 // pred_check_branch
          %609 = sbr.rel (%p607) target = $region40
        $region39: #{blip_for_image_classification.1} parent=11 // pred_region
          _
        $region40: #{blip_for_image_classification.1} parent=11 // pred_fallthru
          _
        // Predicated region
        $region41: #{blip_for_image_classification.1} parent=11 // pred_check
          %p610 = pneg %p548
        $region42: #{blip_for_image_classification.1} parent=11 // pred_check_branch
          %612 = sbr.rel (%p610) target = $region44
        $region43: #{blip_for_image_classification.1} parent=11 // pred_region
          _
        $region44: #{blip_for_image_classification.1} parent=11 // pred_fallthru
          _
      $region12: #{blip_for_image_classification.1} parent=5 // pred_fallthru
        _
      %p613 = scmp.lt.s32.totalorder %s30, 4
      // Predicated region
      $region45: #{blip_for_image_classification.1} parent=5 // pred_check
        %p614 = pneg %p613
      $region46: #{blip_for_image_classification.1} parent=5 // pred_check_branch
        %616 = sbr.rel (%p614) target = $region48
      $region47: #{blip_for_image_classification.1} parent=5 // pred_region
        // Predicated region
        $region49: #{blip_for_image_classification.1} parent=47 // pred_check
          %p617 = pneg %p62
        $region50: #{blip_for_image_classification.1} parent=47 // pred_check_branch
          %619 = sbr.rel (%p617) target = $region52
        $region51: #{blip_for_image_classification.1} parent=47 // pred_region
          %p620 = scmp.lt.s32.totalorder %s37, 1
          %s621 = scalar_select %p620, %s37, 1
          %s622 = smul.addr %s621, 2
          %s623 = smul.addr %s622, 2
          %s624 = scalar_lea.vmem %s0, %s623
        $region52: #{blip_for_image_classification.1} parent=47 // pred_fallthru
          _
        // Predicated region
        $region53: #{blip_for_image_classification.1} parent=47 // pred_check
          %p625 = pneg %p172
        $region54: #{blip_for_image_classification.1} parent=47 // pred_check_branch
          %627 = sbr.rel (%p625) target = $region56
        $region55: #{blip_for_image_classification.1} parent=47 // pred_region
          %p628 = scmp.lt.s32.totalorder %s38, 1
          %s629 = scalar_select %p628, %s38, 1
          %s630 = scalar_lea.vmem %s5, %s629
        $region56: #{blip_for_image_classification.1} parent=47 // pred_fallthru
          _
        // Predicated region
        $region57: #{blip_for_image_classification.1} parent=47 // pred_check
          %p631 = pneg %p198
        $region58: #{blip_for_image_classification.1} parent=47 // pred_check_branch
          %633 = sbr.rel (%p631) target = $region60
        $region59: #{blip_for_image_classification.1} parent=47 // pred_region
          %p634 = scmp.lt.s32.totalorder %s38, 1
          %s635 = scalar_select %p634, %s38, 1
          %s636 = scalar_lea.vmem %s6, %s635
        $region60: #{blip_for_image_classification.1} parent=47 // pred_fallthru
          _
        // Predicated region
        $region61: #{blip_for_image_classification.1} parent=47 // pred_check
          %p637 = pneg %p224
        $region62: #{blip_for_image_classification.1} parent=47 // pred_check_branch
          %639 = sbr.rel (%p637) target = $region64
        $region63: #{blip_for_image_classification.1} parent=47 // pred_region
          %p640 = scmp.lt.s32.totalorder %s38, 1
          %s641 = scalar_select %p640, %s38, 1
          %s642 = smul.addr %s641, 8
          %s643 = smul.addr %s642, 4
          %s644 = scalar_lea.vmem %s7, %s643
        $region64: #{blip_for_image_classification.1} parent=47 // pred_fallthru
          _
        // Predicated region
        $region65: #{blip_for_image_classification.1} parent=47 // pred_check
          %p645 = pneg %p250
        $region66: #{blip_for_image_classification.1} parent=47 // pred_check_branch
          %647 = sbr.rel (%p645) target = $region68
        $region67: #{blip_for_image_classification.1} parent=47 // pred_region
          %p648 = scmp.lt.s32.totalorder %s38, 1
          %s649 = scalar_select %p648, %s38, 1
          %s650 = smul.addr %s649, 2
          %s651 = scalar_lea.vmem %s8, %s650
        $region68: #{blip_for_image_classification.1} parent=47 // pred_fallthru
          _
        // Predicated region
        $region69: #{blip_for_image_classification.1} parent=47 // pred_check
          %p652 = pneg %p276
        $region70: #{blip_for_image_classification.1} parent=47 // pred_check_branch
          %654 = sbr.rel (%p652) target = $region72
        $region71: #{blip_for_image_classification.1} parent=47 // pred_region
          %p655 = scmp.lt.s32.totalorder %s38, 1
          %s656 = scalar_select %p655, %s38, 1
          %s657 = smul.addr %s656, 4
          %s658 = smul.addr %s657, 4
          %s659 = scalar_lea.vmem %s9, %s658
        $region72: #{blip_for_image_classification.1} parent=47 // pred_fallthru
          _
        // Predicated region
        $region73: #{blip_for_image_classification.1} parent=47 // pred_check
          %p660 = pneg %p302
        $region74: #{blip_for_image_classification.1} parent=47 // pred_check_branch
          %662 = sbr.rel (%p660) target = $region76
        $region75: #{blip_for_image_classification.1} parent=47 // pred_region
          %p663 = scmp.lt.s32.totalorder %s38, 1
          %s664 = scalar_select %p663, %s38, 1
          %s665 = scalar_lea.vmem %s10, %s664
        $region76: #{blip_for_image_classification.1} parent=47 // pred_fallthru
          _
        // Predicated region
        $region77: #{blip_for_image_classification.1} parent=47 // pred_check
          %p666 = pneg %p328
        $region78: #{blip_for_image_classification.1} parent=47 // pred_check_branch
          %668 = sbr.rel (%p666) target = $region80
        $region79: #{blip_for_image_classification.1} parent=47 // pred_region
          %p669 = scmp.lt.s32.totalorder %s38, 1
          %s670 = scalar_select %p669, %s38, 1
          %s671 = scalar_lea.vmem %s11, %s670
        $region80: #{blip_for_image_classification.1} parent=47 // pred_fallthru
          _
        // Predicated region
        $region81: #{blip_for_image_classification.1} parent=47 // pred_check
          %p672 = pneg %p354
        $region82: #{blip_for_image_classification.1} parent=47 // pred_check_branch
          %674 = sbr.rel (%p672) target = $region84
        $region83: #{blip_for_image_classification.1} parent=47 // pred_region
          %p675 = scmp.lt.s32.totalorder %s38, 1
          %s676 = scalar_select %p675, %s38, 1
          %s677 = scalar_lea.vmem %s12, %s676
        $region84: #{blip_for_image_classification.1} parent=47 // pred_fallthru
          _
        // Predicated region
        $region85: #{blip_for_image_classification.1} parent=47 // pred_check
          %p678 = pneg %p380
        $region86: #{blip_for_image_classification.1} parent=47 // pred_check_branch
          %680 = sbr.rel (%p678) target = $region88
        $region87: #{blip_for_image_classification.1} parent=47 // pred_region
          %p681 = scmp.lt.s32.totalorder %s38, 1
          %s682 = scalar_select %p681, %s38, 1
          %s683 = smul.addr %s682, 4
          %s684 = smul.addr %s683, 4
          %s685 = scalar_lea.vmem %s13, %s684
        $region88: #{blip_for_image_classification.1} parent=47 // pred_fallthru
          _
        // Predicated region
        $region89: #{blip_for_image_classification.1} parent=47 // pred_check
          %p686 = pneg %p406
        $region90: #{blip_for_image_classification.1} parent=47 // pred_check_branch
          %688 = sbr.rel (%p686) target = $region92
        $region91: #{blip_for_image_classification.1} parent=47 // pred_region
          %p689 = scmp.lt.s32.totalorder %s38, 1
          %s690 = scalar_select %p689, %s38, 1
          %s691 = scalar_lea.vmem %s14, %s690
        $region92: #{blip_for_image_classification.1} parent=47 // pred_fallthru
          _
        // Predicated region
        $region93: #{blip_for_image_classification.1} parent=47 // pred_check
          %p692 = pneg %p432
        $region94: #{blip_for_image_classification.1} parent=47 // pred_check_branch
          %694 = sbr.rel (%p692) target = $region96
        $region95: #{blip_for_image_classification.1} parent=47 // pred_region
          %p695 = scmp.lt.s32.totalorder %s38, 1
          %s696 = scalar_select %p695, %s38, 1
          %s697 = smul.addr %s696, 8
          %s698 = smul.addr %s697, 4
          %s699 = scalar_lea.vmem %s15, %s698
        $region96: #{blip_for_image_classification.1} parent=47 // pred_fallthru
          _
        // Predicated region
        $region97: #{blip_for_image_classification.1} parent=47 // pred_check
          %p700 = pneg %p458
        $region98: #{blip_for_image_classification.1} parent=47 // pred_check_branch
          %702 = sbr.rel (%p700) target = $region100
        $region99: #{blip_for_image_classification.1} parent=47 // pred_region
          %p703 = scmp.lt.s32.totalorder %s38, 1
          %s704 = scalar_select %p703, %s38, 1
          %s705 = scalar_lea.vmem %s16, %s704
        $region100: #{blip_for_image_classification.1} parent=47 // pred_fallthru
          _
      $region48: #{blip_for_image_classification.1} parent=5 // pred_fallthru
        _
      %p706 = scmp.le.s32.totalorder 1, %s30
      %p707 = scmp.lt.s32.totalorder %s30, 5
      %p708 = pnand %p706, %p707
      %p709 = pneg %p708
      // Predicated region
      $region101: #{blip_for_image_classification.1} parent=5 // pred_check
        _
      $region102: #{blip_for_image_classification.1} parent=5 // pred_check_branch
        %711 = sbr.rel (%p708) target = $region104
      $region103: #{blip_for_image_classification.1} parent=5 // pred_region
        %s712 = ssub.s32 %s30, 1
        %p713 = scmp.lt.s32.totalorder %s39, 1
        %s714 = scalar_select %p713, %s39, 1
        %s715 = smul.addr %s714, 2
        %s716 = smul.addr %s715, 2
        %s717 = scalar_lea.vmem %s0, %s716
        %p718 = pneg %p68
        %p719 = pneg %p65
        %p720 = pneg %p89
        %p721 = pneg %p86
        %p722 = pneg %p110
        %p723 = pneg %p107
        %p724 = pneg %p131
        %p725 = pneg %p128
        %p726 = pneg %p152
        %p727 = pneg %p149
        %p728 = scmp.lt.s32.totalorder %s40, 1
        %s729 = scalar_select %p728, %s40, 1
        %s730 = scalar_lea.vmem %s5, %s729
        %p731 = pneg %p178
        %p732 = pneg %p175
        %p733 = scmp.lt.s32.totalorder %s40, 1
        %s734 = scalar_select %p733, %s40, 1
        %s735 = scalar_lea.vmem %s6, %s734
        %p736 = pneg %p204
        %p737 = pneg %p201
        %p738 = scmp.lt.s32.totalorder %s40, 1
        %s739 = scalar_select %p738, %s40, 1
        %s740 = smul.addr %s739, 8
        %s741 = smul.addr %s740, 4
        %s742 = scalar_lea.vmem %s7, %s741
        %p743 = pneg %p230
        %p744 = pneg %p227
        %p745 = scmp.lt.s32.totalorder %s40, 1
        %s746 = scalar_select %p745, %s40, 1
        %s747 = smul.addr %s746, 2
        %s748 = scalar_lea.vmem %s8, %s747
        %p749 = pneg %p256
        %p750 = pneg %p253
        %p751 = scmp.lt.s32.totalorder %s40, 1
        %s752 = scalar_select %p751, %s40, 1
        %s753 = smul.addr %s752, 4
        %s754 = smul.addr %s753, 4
        %s755 = scalar_lea.vmem %s9, %s754
        %p756 = pneg %p282
        %p757 = pneg %p279
        %p758 = scmp.lt.s32.totalorder %s40, 1
        %s759 = scalar_select %p758, %s40, 1
        %s760 = scalar_lea.vmem %s10, %s759
        %p761 = pneg %p308
        %p762 = pneg %p305
        %p763 = scmp.lt.s32.totalorder %s40, 1
        %s764 = scalar_select %p763, %s40, 1
        %s765 = scalar_lea.vmem %s11, %s764
        %p766 = pneg %p334
        %p767 = pneg %p331
        %p768 = scmp.lt.s32.totalorder %s40, 1
        %s769 = scalar_select %p768, %s40, 1
        %s770 = scalar_lea.vmem %s12, %s769
        %p771 = pneg %p360
        %p772 = pneg %p357
        %p773 = scmp.lt.s32.totalorder %s40, 1
        %s774 = scalar_select %p773, %s40, 1
        %s775 = smul.addr %s774, 4
        %s776 = smul.addr %s775, 4
        %s777 = scalar_lea.vmem %s13, %s776
        %p778 = pneg %p386
        %p779 = pneg %p383
        %p780 = scmp.lt.s32.totalorder %s40, 1
        %s781 = scalar_select %p780, %s40, 1
        %s782 = scalar_lea.vmem %s14, %s781
        %p783 = pneg %p412
        %p784 = pneg %p409
        %p785 = scmp.lt.s32.totalorder %s40, 1
        %s786 = scalar_select %p785, %s40, 1
        %s787 = smul.addr %s786, 8
        %s788 = smul.addr %s787, 4
        %s789 = scalar_lea.vmem %s15, %s788
        %p790 = pneg %p438
        %p791 = pneg %p435
        %p792 = scmp.lt.s32.totalorder %s40, 1
        %s793 = scalar_select %p792, %s40, 1
        %s794 = scalar_lea.vmem %s16, %s793
        %p795 = pneg %p464
        %p796 = pneg %p461
        %p797 = pneg %p485
        %p798 = pneg %p482
        %p799 = pneg %p506
        %p800 = pneg %p503
        %p801 = pneg %p527
        %p802 = pneg %p524
        %p803 = pneg %p548
        %p804 = pneg %p545
        %p805 = pneg %p574
        %p806 = pneg %p571
        %s807 = sand.u32 %s561, 1
        %s808 = scalar_lea.sflag [#allocation4], %s807
        %s809 = sand.u32 %s561, 1
        %s810 = scalar_lea.vmem [#allocation3], %s809
        %p811 = scmp.lt.s32.totalorder %s39, 1
        %s812 = scalar_select %p811, %s39, 1
        %s813 = smul.addr %s812, 2
        %s814 = smul.addr %s813, 2
        %s815 = scalar_lea.vmem %s0, %s814
        %p816 = scmp.lt.s32.totalorder %s40, 1
        %s817 = scalar_select %p816, %s40, 1
        %s818 = scalar_lea.vmem %s5, %s817
        %p819 = scmp.lt.s32.totalorder %s40, 1
        %s820 = scalar_select %p819, %s40, 1
        %s821 = scalar_lea.vmem %s6, %s820
        %p822 = scmp.lt.s32.totalorder %s40, 1
        %s823 = scalar_select %p822, %s40, 1
        %s824 = smul.addr %s823, 8
        %s825 = smul.addr %s824, 4
        %s826 = scalar_lea.vmem %s7, %s825
        %p827 = scmp.lt.s32.totalorder %s40, 1
        %s828 = scalar_select %p827, %s40, 1
        %s829 = smul.addr %s828, 2
        %s830 = scalar_lea.vmem %s8, %s829
        %p831 = scmp.lt.s32.totalorder %s40, 1
        %s832 = scalar_select %p831, %s40, 1
        %s833 = smul.addr %s832, 4
        %s834 = smul.addr %s833, 4
        %s835 = scalar_lea.vmem %s9, %s834
        %p836 = scmp.lt.s32.totalorder %s40, 1
        %s837 = scalar_select %p836, %s40, 1
        %s838 = scalar_lea.vmem %s10, %s837
        %p839 = scmp.lt.s32.totalorder %s40, 1
        %s840 = scalar_select %p839, %s40, 1
        %s841 = scalar_lea.vmem %s11, %s840
        %p842 = scmp.lt.s32.totalorder %s40, 1
        %s843 = scalar_select %p842, %s40, 1
        %s844 = scalar_lea.vmem %s12, %s843
        %p845 = scmp.lt.s32.totalorder %s40, 1
        %s846 = scalar_select %p845, %s40, 1
        %s847 = smul.addr %s846, 4
        %s848 = smul.addr %s847, 4
        %s849 = scalar_lea.vmem %s13, %s848
        %p850 = scmp.lt.s32.totalorder %s40, 1
        %s851 = scalar_select %p850, %s40, 1
        %s852 = scalar_lea.vmem %s14, %s851
        %p853 = scmp.lt.s32.totalorder %s40, 1
        %s854 = scalar_select %p853, %s40, 1
        %s855 = smul.addr %s854, 8
        %s856 = smul.addr %s855, 4
        %s857 = scalar_lea.vmem %s15, %s856
        %p858 = scmp.lt.s32.totalorder %s40, 1
        %s859 = scalar_select %p858, %s40, 1
        %s860 = scalar_lea.vmem %s16, %s859
        %p862 = scmp.eq.s32.totalorder %s40, 0
        // Predicated region
        $region105: #{blip_for_image_classification.1} parent=103 // pred_check
          %p863 = pneg %p862
        $region106: #{blip_for_image_classification.1} parent=103 // pred_check_branch
          %865 = sbr.rel (%p863) target = $region108
        $region107: #{blip_for_image_classification.1} parent=103 // pred_region
          %v866 = vld [vmem:[%s815] sm:$0xf]
          %v867 = vld [vmem:[%s1] sm:$0xf]
          %v868 = vld [vmem:[%s1 + $0x4] sm:$0xf]
          %v869 = vld [vmem:[%s1 + $0x8] sm:$0xf]
          %v870 = vld [vmem:[%s1 + $0xc] sm:$0xf]
          %v871 = vld [vmem:[%s1 + $0x10] sm:$0xf]
          %v872 = vld [vmem:[%s1 + $0x14] sm:$0xf]
          %v873 = vld [vmem:[%s1 + $0x18] sm:$0xf]
          %v874 = vld [vmem:[%s1 + $0x1c] sm:$0xf]
          %v875 = vld [vmem:[%s1 + $0x20] sm:$0xf]
          %v876 = vld [vmem:[%s1 + $0x24] sm:$0xf]
          %v877 = vld [vmem:[%s1 + $0x28] sm:$0xf]
          %v878 = vld [vmem:[%s1 + $0x2c] sm:$0xf]
          %v879 = vld [vmem:[%s1 + $0x30] sm:$0xf]
          %v880 = vld [vmem:[%s1 + $0x34] sm:$0xf]
          %v881 = vld [vmem:[%s1 + $0x38] sm:$0xf]
          %v882 = vld [vmem:[%s1 + $0x3c] sm:$0xf]
          %v883 = vld [vmem:[%s1 + $0x40] sm:$0xf]
          %v884 = vld [vmem:[%s1 + $0x44] sm:$0xf]
          %v885 = vld [vmem:[%s1 + $0x48] sm:$0xf]
          %v886 = vld [vmem:[%s1 + $0x4c] sm:$0xf]
          %v887 = vld [vmem:[%s1 + $0x50] sm:$0xf]
          %v888 = vld [vmem:[%s1 + $0x54] sm:$0xf]
          %v889 = vld [vmem:[%s1 + $0x58] sm:$0xf]
          %v890 = vld [vmem:[%s1 + $0x5c] sm:$0xf]
          %v891 = vld [vmem:[%s2] sm:$0x1]
          %v893 = vlaneseq
          %v894 = vshrl.u32 %v893, 7
          %v895 = vsub.s32 0, %v894
          %v896 = vrot.slane %v891, %v895
          %v900 = vunpack.c.l.s4 1983009808
          %v901 = vunpack.c.0.s8 %v900
          %v902 = vlaneseq
          %v903 = vshrl.u32 %v902, 7
          %v904 = vsub.s32 %v901, %v903
          %v905 = vrot.slane %v866, %v904
          %v906 = vcombine.high %v905, %v905
          %v932 = vunpack.c.l.b16 %v867
          %v933 = vunpack.c.l.b16 %v868
          %v934 = vunpack.c.l.b16 %v869
          %v935 = vunpack.c.l.b16 %v870
          %v936 = vunpack.c.l.b16 %v871
          %v937 = vunpack.c.l.b16 %v872
          %v938 = vunpack.c.l.b16 %v873
          %v939 = vunpack.c.l.b16 %v874
          %v940 = vunpack.c.l.b16 %v875
          %v941 = vunpack.c.l.b16 %v876
          %v942 = vunpack.c.l.b16 %v877
          %v943 = vunpack.c.l.b16 %v878
          %v944 = vunpack.c.l.b16 %v879
          %v945 = vunpack.c.l.b16 %v880
          %v946 = vunpack.c.l.b16 %v881
          %v947 = vunpack.c.l.b16 %v882
          %v948 = vunpack.c.l.b16 %v883
          %v949 = vunpack.c.l.b16 %v884
          %v950 = vunpack.c.l.b16 %v885
          %v951 = vunpack.c.l.b16 %v886
          %v952 = vunpack.c.l.b16 %v887
          %v953 = vunpack.c.l.b16 %v888
          %v954 = vunpack.c.l.b16 %v889
          %v955 = vunpack.c.l.b16 %v890
          %v956 = vpack.c.b16 %v933, %v932
          %v957 = vpack.c.b16 %v935, %v934
          %v958 = vpack.c.b16 %v937, %v936
          %v959 = vpack.c.b16 %v939, %v938
          %v960 = vpack.c.b16 %v941, %v940
          %v961 = vpack.c.b16 %v943, %v942
          %v962 = vpack.c.b16 %v945, %v944
          %v963 = vpack.c.b16 %v947, %v946
          %v964 = vpack.c.b16 %v949, %v948
          %v965 = vpack.c.b16 %v951, %v950
          %v966 = vpack.c.b16 %v953, %v952
          %v967 = vpack.c.b16 %v955, %v954
          %vm980 = vcmask 523264
          %v982 = vsel %vm980, %v906, 0
          %984 = vmatprep.subr.bf16.mxu0 0
          %985 = vmatpush1.bf16.msra.mxu0 %v956
          %986 = vmatprep.subr.bf16.mxu0 0
          %987 = vmatpush1.bf16.msra.mxu0 %v957
          %988 = vmatprep.subr.bf16.mxu0 0
          %989 = vmatpush1.bf16.msra.mxu0 %v958
          %990 = vmatprep.subr.bf16.mxu0 0
          %991 = vmatpush1.bf16.msra.mxu0 %v959
          %992 = vmatprep.subr.bf16.mxu0 0
          %993 = vmatpush1.bf16.msra.mxu0 %v960
          %994 = vmatprep.subr.bf16.mxu0 0
          %995 = vmatpush1.bf16.msra.mxu0 %v961
          %996 = vmatprep.subr.bf16.mxu0 0
          %997 = vmatpush1.bf16.msra.mxu0 %v962
          %998 = vmatprep.subr.bf16.mxu0 0
          %999 = vmatpush1.bf16.msra.mxu0 %v963
          %1000 = vmatprep.subr.bf16.mxu0 0
          %1001 = vmatpush1.bf16.msra.mxu0 %v964
          %1002 = vmatprep.subr.bf16.mxu0 0
          %1003 = vmatpush1.bf16.msra.mxu0 %v965
          %1004 = vmatprep.subr.bf16.mxu0 0
          %1005 = vmatpush1.bf16.msra.mxu0 %v966
          %1006 = vmatprep.subr.bf16.mxu0 0
          %1007 = vmatpush1.bf16.msra.mxu0 %v967
          %1008 = vmatprep.subr.bf16.mxu0 0
          %1009 = vmatpush1.bf16.msra.mxu0 0
          %1010 = vmatprep.subr.bf16.mxu0 0
          %1011 = vmatpush1.bf16.msra.mxu0 0
          %1012 = vmatprep.subr.bf16.mxu0 0
          %1013 = vmatpush1.bf16.msra.mxu0 0
          %1014 = vmatprep.subr.bf16.mxu0 0
          %1015 = vmatpush1.bf16.msra.mxu0 0
          %1016 = vmatprep.mubr.bf16.mxu0 %v982
          %1017 = vmatmul.mubr.bf16.gmra.mrb[0].mxu0 %v905
          %v1018 = vpop.f32.mrb[0].mxu0
          %v1019 = vadd.f32 %v896, %v1018
          %v1020 = vpop.f32.mrb[0].mxu0
          %v1021 = vpop.f32.mrb[0].mxu0
          %v1022 = vpop.f32.mrb[0].mxu0
          %1023 = vdwg.mxu0
          %vm1024 = vcmask 261120
          %1025 = vst.msk [vmem:[#allocation2] sm:$0xff] %vm1024, 0.0
          %v1026 = vld [vmem:[%s3] sm:$0x1]
          %v1027 = vld [vmem:[%s4] sm:$0x1]
          %v1028 = vadd.f32 %v1026, %v1027
          %vm1029 = vcmask 253952
          %1030 = vst.msk [vmem:[#allocation2] sm:$0x1] %vm1029, %v1028
          %v1031 = vld [vmem:[%s4 + $0x1] sm:$0xf]
          %v1032 = vadd.f32 %v1019, %v1031
          %vm1033 = vcmask 257024
          %1034 = vst.msk [vmem:[#allocation2 + $0x1] sm:$0xf] %vm1033, %v1032
        $region108: #{blip_for_image_classification.1} parent=103 // pred_fallthru
          _
        %v1035 = vld [vmem:[#allocation2] sm:$0xff]
        %v1036 = vld [vmem:[%s818] sm:$0x1]
        %v1037 = vld [vmem:[%s821] sm:$0x1]
        %vm1038 = vcmask 261120
        %v1039 = vsel %vm1038, %v1035, 0.0
        %1040 = vadd.xlane.f32.xlu0 %v1039
        %v1041 = vpop.xlane.xlu0 %1040
        %v1042 = vrcp.pop 32.0
        %v1043 = vmul.f32 %v1041, %v1042
        %v1044 = vsub.f32 %v1035, %v1043
        %v1045 = vmul.f32 %v1044, %v1044
        %v1046 = vsel %vm1038, %v1045, 0.0
        %1047 = vadd.xlane.f32.xlu0 %v1046
        %v1048 = vpop.xlane.xlu0 %1047
        %v1049 = vmul.f32 %v1048, %v1042
        %v1050 = vadd.f32 %v1049, 1e-05
        %v1051 = vrsqrt.pop %v1050
        %v1052 = vmul.f32 %v1044, %v1051
        %v1054 = vlaneseq
        %v1055 = vshrl.u32 %v1054, 7
        %v1056 = vsub.s32 0, %v1055
        %v1057 = vrot.slane %v1036, %v1056
        %v1059 = vmul.f32 %v1052, %v1057
        %v1061 = vlaneseq
        %v1062 = vshrl.u32 %v1061, 7
        %v1063 = vsub.s32 0, %v1062
        %v1064 = vrot.slane %v1037, %v1063
        %v1066 = vadd.f32 %v1059, %v1064
        %v1067 = vpack.c.bf16 %v1066, %v1066
        %v1068 = vld [vmem:[%s826] sm:$0xf]
        %v1069 = vld [vmem:[%s826 + $0x4] sm:$0xf]
        %v1070 = vld [vmem:[%s826 + $0x8] sm:$0xf]
        %v1071 = vld [vmem:[%s826 + $0xc] sm:$0xf]
        %v1072 = vld [vmem:[%s826 + $0x10] sm:$0xf]
        %v1073 = vld [vmem:[%s826 + $0x14] sm:$0xf]
        %v1074 = vld [vmem:[%s826 + $0x18] sm:$0xf]
        %v1075 = vld [vmem:[%s826 + $0x1c] sm:$0xf]
        %v1076 = vld [vmem:[%s830] sm:$0x1]
        %v1077 = vld [vmem:[%s830 + $0x1] sm:$0x1]
        %v1080 = vlaneseq
        %v1081 = vshrl.u32 %v1080, 7
        %v1082 = vsub.s32 0, %v1081
        %v1083 = vrot.slane %v1076, %v1082
        %v1084 = vlaneseq
        %v1085 = vshrl.u32 %v1084, 7
        %v1086 = vsub.s32 0, %v1085
        %v1087 = vrot.slane %v1077, %v1086
        %v1094 = vunpack.c.l.b16 %v1068
        %v1095 = vunpack.c.l.b16 %v1069
        %v1096 = vunpack.c.l.b16 %v1070
        %v1097 = vunpack.c.l.b16 %v1071
        %v1098 = vpack.c.b16 %v1095, %v1094
        %v1099 = vpack.c.b16 %v1097, %v1096
        %v1103 = vsel %vm1038, %v1067, 0
        %1105 = vmatprep.subr.bf16.mxu0 0
        %1106 = vmatpush1.bf16.msra.mxu0 %v1098
        %1107 = vmatprep.subr.bf16.mxu0 0
        %1108 = vmatpush1.bf16.msra.mxu0 %v1099
        %1109 = vmatprep.subr.bf16.mxu0 0
        %1110 = vmatpush1.bf16.msra.mxu0 0
        %1111 = vmatprep.subr.bf16.mxu0 0
        %1112 = vmatpush1.bf16.msra.mxu0 0
        %1113 = vmatprep.subr.bf16.mxu0 0
        %1114 = vmatpush1.bf16.msra.mxu0 0
        %1115 = vmatprep.subr.bf16.mxu0 0
        %1116 = vmatpush1.bf16.msra.mxu0 0
        %1117 = vmatprep.subr.bf16.mxu0 0
        %1118 = vmatpush1.bf16.msra.mxu0 0
        %1119 = vmatprep.subr.bf16.mxu0 0
        %1120 = vmatpush1.bf16.msra.mxu0 0
        %1121 = vmatprep.subr.bf16.mxu0 0
        %1122 = vmatpush1.bf16.msra.mxu0 0
        %1123 = vmatprep.subr.bf16.mxu0 0
        %1124 = vmatpush1.bf16.msra.mxu0 0
        %1125 = vmatprep.subr.bf16.mxu0 0
        %1126 = vmatpush1.bf16.msra.mxu0 0
        %1127 = vmatprep.subr.bf16.mxu0 0
        %1128 = vmatpush1.bf16.msra.mxu0 0
        %1129 = vmatprep.subr.bf16.mxu0 0
        %1130 = vmatpush1.bf16.msra.mxu0 0
        %1131 = vmatprep.subr.bf16.mxu0 0
        %1132 = vmatpush1.bf16.msra.mxu0 0
        %1133 = vmatprep.subr.bf16.mxu0 0
        %1134 = vmatpush1.bf16.msra.mxu0 0
        %1135 = vmatprep.subr.bf16.mxu0 0
        %1136 = vmatpush1.bf16.msra.mxu0 0
        %1137 = vmatprep.mubr.bf16.mxu0 0
        %1138 = vmatmul.mubr.bf16.gmra.mrb[0].mxu0 %v1103
        %v1139 = vpop.f32.mrb[0].mxu0
        %v1140 = vadd.f32 %v1083, %v1139
        %v1141 = vpop.f32.mrb[0].mxu0
        %v1142 = vpop.f32.mrb[0].mxu0
        %v1143 = vpop.f32.mrb[0].mxu0
        %1144 = vdwg.mxu0
        %v1149 = vunpack.c.l.b16 %v1072
        %v1150 = vunpack.c.l.b16 %v1073
        %v1151 = vunpack.c.l.b16 %v1074
        %v1152 = vunpack.c.l.b16 %v1075
        %v1153 = vpack.c.b16 %v1150, %v1149
        %v1154 = vpack.c.b16 %v1152, %v1151
        %1157 = vmatprep.subr.bf16.mxu0 0
        %1158 = vmatpush1.bf16.msra.mxu0 %v1153
        %1159 = vmatprep.subr.bf16.mxu0 0
        %1160 = vmatpush1.bf16.msra.mxu0 %v1154
        %1161 = vmatprep.subr.bf16.mxu0 0
        %1162 = vmatpush1.bf16.msra.mxu0 0
        %1163 = vmatprep.subr.bf16.mxu0 0
        %1164 = vmatpush1.bf16.msra.mxu0 0
        %1165 = vmatprep.subr.bf16.mxu0 0
        %1166 = vmatpush1.bf16.msra.mxu0 0
        %1167 = vmatprep.subr.bf16.mxu0 0
        %1168 = vmatpush1.bf16.msra.mxu0 0
        %1169 = vmatprep.subr.bf16.mxu0 0
        %1170 = vmatpush1.bf16.msra.mxu0 0
        %1171 = vmatprep.subr.bf16.mxu0 0
        %1172 = vmatpush1.bf16.msra.mxu0 0
        %1173 = vmatprep.subr.bf16.mxu0 0
        %1174 = vmatpush1.bf16.msra.mxu0 0
        %1175 = vmatprep.subr.bf16.mxu0 0
        %1176 = vmatpush1.bf16.msra.mxu0 0
        %1177 = vmatprep.subr.bf16.mxu0 0
        %1178 = vmatpush1.bf16.msra.mxu0 0
        %1179 = vmatprep.subr.bf16.mxu0 0
        %1180 = vmatpush1.bf16.msra.mxu0 0
        %1181 = vmatprep.subr.bf16.mxu0 0
        %1182 = vmatpush1.bf16.msra.mxu0 0
        %1183 = vmatprep.subr.bf16.mxu0 0
        %1184 = vmatpush1.bf16.msra.mxu0 0
        %1185 = vmatprep.subr.bf16.mxu0 0
        %1186 = vmatpush1.bf16.msra.mxu0 0
        %1187 = vmatprep.subr.bf16.mxu0 0
        %1188 = vmatpush1.bf16.msra.mxu0 0
        %1189 = vmatprep.mubr.bf16.mxu0 0
        %1190 = vmatmul.mubr.bf16.gmra.mrb[0].mxu0 %v1103
        %v1191 = vpop.f32.mrb[0].mxu0
        %v1192 = vadd.f32 %v1087, %v1191
        %v1193 = vpop.f32.mrb[0].mxu0
        %v1194 = vpop.f32.mrb[0].mxu0
        %v1195 = vpop.f32.mrb[0].mxu0
        %1196 = vdwg.mxu0
        %v1197 = vpack.c.bf16 %v1140, %v1140
        %v1198 = vpack.c.bf16 %v1192, %v1192
        %1200 = vrot.lane.b32.xlu0 %v1197, 112
        %v1201 = vpop.permute.xlu0 %1200
        %vm1202 = vcmask 130048
        %v1204 = vsel %vm1202, %v1197, 0
        %v1207 = vsel %vm1202, %v1201, 0
        %1209 = vmatprep.subr.bf16.mxu0 0
        %1210 = vmatpush1.bf16.xpose.msra.mxu0 %v1207
        %1211 = vmatprep.subr.bf16.mxu0 0
        %1212 = vmatpush1.bf16.xpose.msra.mxu0 0
        %1213 = vmatprep.subr.bf16.mxu0 0
        %1214 = vmatpush1.bf16.xpose.msra.mxu0 0
        %1215 = vmatprep.subr.bf16.mxu0 0
        %1216 = vmatpush1.bf16.xpose.msra.mxu0 0
        %1217 = vmatprep.subr.bf16.mxu0 0
        %1218 = vmatpush1.bf16.xpose.msra.mxu0 0
        %1219 = vmatprep.subr.bf16.mxu0 0
        %1220 = vmatpush1.bf16.xpose.msra.mxu0 0
        %1221 = vmatprep.subr.bf16.mxu0 0
        %1222 = vmatpush1.bf16.xpose.msra.mxu0 0
        %1223 = vmatprep.subr.bf16.mxu0 0
        %1224 = vmatpush1.bf16.xpose.msra.mxu0 0
        %1225 = vmatprep.subr.bf16.mxu0 0
        %1226 = vmatpush1.bf16.xpose.msra.mxu0 0
        %1227 = vmatprep.subr.bf16.mxu0 0
        %1228 = vmatpush1.bf16.xpose.msra.mxu0 0
        %1229 = vmatprep.subr.bf16.mxu0 0
        %1230 = vmatpush1.bf16.xpose.msra.mxu0 0
        %1231 = vmatprep.subr.bf16.mxu0 0
        %1232 = vmatpush1.bf16.xpose.msra.mxu0 0
        %1233 = vmatprep.subr.bf16.mxu0 0
        %1234 = vmatpush1.bf16.xpose.msra.mxu0 0
        %1235 = vmatprep.subr.bf16.mxu0 0
        %1236 = vmatpush1.bf16.xpose.msra.mxu0 0
        %1237 = vmatprep.subr.bf16.mxu0 0
        %1238 = vmatpush1.bf16.xpose.msra.mxu0 0
        %1239 = vmatprep.subr.bf16.mxu0 0
        %1240 = vmatpush1.bf16.xpose.msra.mxu0 0
        %1241 = vmatprep.mubr.bf16.mxu0 0
        %1242 = vmatmul.mubr.bf16.gmra.mrb[0].mxu0 %v1204
        %v1243 = vpop.f32.mrb[0].mxu0
        %v1244 = vadd.f32 0.0, %v1243
        %v1245 = vpop.f32.mrb[0].mxu0
        %v1246 = vpop.f32.mrb[0].mxu0
        %v1247 = vpop.f32.mrb[0].mxu0
        %1248 = vdwg.mxu0
        %1250 = vrot.lane.b32.xlu0 %v1198, 112
        %v1251 = vpop.permute.xlu0 %1250
        %v1253 = vsel %vm1202, %v1198, 0
        %v1256 = vsel %vm1202, %v1251, 0
        %1258 = vmatprep.subr.bf16.mxu0 0
        %1259 = vmatpush1.bf16.xpose.msra.mxu0 %v1256
        %1260 = vmatprep.subr.bf16.mxu0 0
        %1261 = vmatpush1.bf16.xpose.msra.mxu0 0
        %1262 = vmatprep.subr.bf16.mxu0 0
        %1263 = vmatpush1.bf16.xpose.msra.mxu0 0
        %1264 = vmatprep.subr.bf16.mxu0 0
        %1265 = vmatpush1.bf16.xpose.msra.mxu0 0
        %1266 = vmatprep.subr.bf16.mxu0 0
        %1267 = vmatpush1.bf16.xpose.msra.mxu0 0
        %1268 = vmatprep.subr.bf16.mxu0 0
        %1269 = vmatpush1.bf16.xpose.msra.mxu0 0
        %1270 = vmatprep.subr.bf16.mxu0 0
        %1271 = vmatpush1.bf16.xpose.msra.mxu0 0
        %1272 = vmatprep.subr.bf16.mxu0 0
        %1273 = vmatpush1.bf16.xpose.msra.mxu0 0
        %1274 = vmatprep.subr.bf16.mxu0 0
        %1275 = vmatpush1.bf16.xpose.msra.mxu0 0
        %1276 = vmatprep.subr.bf16.mxu0 0
        %1277 = vmatpush1.bf16.xpose.msra.mxu0 0
        %1278 = vmatprep.subr.bf16.mxu0 0
        %1279 = vmatpush1.bf16.xpose.msra.mxu0 0
        %1280 = vmatprep.subr.bf16.mxu0 0
        %1281 = vmatpush1.bf16.xpose.msra.mxu0 0
        %1282 = vmatprep.subr.bf16.mxu0 0
        %1283 = vmatpush1.bf16.xpose.msra.mxu0 0
        %1284 = vmatprep.subr.bf16.mxu0 0
        %1285 = vmatpush1.bf16.xpose.msra.mxu0 0
        %1286 = vmatprep.subr.bf16.mxu0 0
        %1287 = vmatpush1.bf16.xpose.msra.mxu0 0
        %1288 = vmatprep.subr.bf16.mxu0 0
        %1289 = vmatpush1.bf16.xpose.msra.mxu0 0
        %1290 = vmatprep.mubr.bf16.mxu0 0
        %1291 = vmatmul.mubr.bf16.gmra.mrb[0].mxu0 %v1253
        %v1292 = vpop.f32.mrb[0].mxu0
        %v1293 = vadd.f32 0.0, %v1292
        %v1294 = vpop.f32.mrb[0].mxu0
        %v1295 = vpop.f32.mrb[0].mxu0
        %v1296 = vpop.f32.mrb[0].mxu0
        %1297 = vdwg.mxu0
        %v1298 = vmul.f32 %v1244, 0.25
        %v1299 = vmul.f32 %v1293, 0.25
        %v1300 = vlaneseq
        %v1301 = vand.u32 %v1300, 127
        %vm1302 = vcmp.lt.s32.totalorder %v1301, 5
        %v1303 = vsel %vm1302, %v1298, -1e+30
        %v1304 = vsel %vm1302, %v1299, -1e+30
        %vm1305 = vcmask 64512
        %v1306 = vsel %vm1305, %v1303, -inf
        %1307 = vmax.xlane.f32.xlu0 %v1306
        %v1308 = vpop.xlane.xlu0 %1307
        %v1309 = vsel %vm1305, %v1304, -inf
        %1310 = vmax.xlane.f32.xlu0 %v1309
        %v1311 = vpop.xlane.xlu0 %1310
        %v1312 = vsub.f32 %v1303, %v1308
        %v1313 = vsub.f32 %v1304, %v1311
        %v1314 = vmul.f32 %v1312, 1.442695
        %v1315 = vpow.pop %v1314
        %v1316 = vmul.f32 %v1313, 1.442695
        %v1317 = vpow.pop %v1316
        %v1318 = vsel %vm1305, %v1315, 0.0
        %1319 = vadd.xlane.f32.xlu0 %v1318
        %v1320 = vpop.xlane.xlu0 %1319
        %v1321 = vsel %vm1305, %v1317, 0.0
        %1322 = vadd.xlane.f32.xlu0 %v1321
        %v1323 = vpop.xlane.xlu0 %1322
        %v1324 = vrcp.pop %v1320
        %v1325 = vrcp.pop %v1323
        %v1326 = vmul.f32 %v1315, %v1324
        %v1327 = vmul.f32 %v1317, %v1325
        %v1328 = vpack.c.bf16 %v1326, %v1326
        %v1329 = vpack.c.bf16 %v1327, %v1327
        %1330 = vrot.lane.b32.xlu0 %v1197, 96
        %v1331 = vpop.permute.xlu0 %1330
        %v1333 = vsel %vm1305, %v1328, 0
        %vm1335 = vcmask 1043456
        %v1337 = vsel %vm1335, %v1331, 0
        %1339 = vmatprep.subr.bf16.mxu0 0
        %1340 = vmatpush1.bf16.msra.mxu0 %v1337
        %1341 = vmatprep.subr.bf16.mxu0 0
        %1342 = vmatpush1.bf16.msra.mxu0 0
        %1343 = vmatprep.subr.bf16.mxu0 0
        %1344 = vmatpush1.bf16.msra.mxu0 0
        %1345 = vmatprep.subr.bf16.mxu0 0
        %1346 = vmatpush1.bf16.msra.mxu0 0
        %1347 = vmatprep.subr.bf16.mxu0 0
        %1348 = vmatpush1.bf16.msra.mxu0 0
        %1349 = vmatprep.subr.bf16.mxu0 0
        %1350 = vmatpush1.bf16.msra.mxu0 0
        %1351 = vmatprep.subr.bf16.mxu0 0
        %1352 = vmatpush1.bf16.msra.mxu0 0
        %1353 = vmatprep.subr.bf16.mxu0 0
        %1354 = vmatpush1.bf16.msra.mxu0 0
        %1355 = vmatprep.subr.bf16.mxu0 0
        %1356 = vmatpush1.bf16.msra.mxu0 0
        %1357 = vmatprep.subr.bf16.mxu0 0
        %1358 = vmatpush1.bf16.msra.mxu0 0
        %1359 = vmatprep.subr.bf16.mxu0 0
        %1360 = vmatpush1.bf16.msra.mxu0 0
        %1361 = vmatprep.subr.bf16.mxu0 0
        %1362 = vmatpush1.bf16.msra.mxu0 0
        %1363 = vmatprep.subr.bf16.mxu0 0
        %1364 = vmatpush1.bf16.msra.mxu0 0
        %1365 = vmatprep.subr.bf16.mxu0 0
        %1366 = vmatpush1.bf16.msra.mxu0 0
        %1367 = vmatprep.subr.bf16.mxu0 0
        %1368 = vmatpush1.bf16.msra.mxu0 0
        %1369 = vmatprep.subr.bf16.mxu0 0
        %1370 = vmatpush1.bf16.msra.mxu0 0
        %1371 = vmatprep.mubr.bf16.mxu0 0
        %1372 = vmatmul.mubr.bf16.gmra.mrb[0].mxu0 %v1333
        %v1373 = vpop.f32.mrb[0].mxu0
        %v1374 = vadd.f32 0.0, %v1373
        %v1375 = vpop.f32.mrb[0].mxu0
        %v1376 = vpop.f32.mrb[0].mxu0
        %v1377 = vpop.f32.mrb[0].mxu0
        %1378 = vdwg.mxu0
        %1379 = vrot.lane.b32.xlu0 %v1198, 96
        %v1380 = vpop.permute.xlu0 %1379
        %v1382 = vsel %vm1305, %v1329, 0
        %v1385 = vsel %vm1335, %v1380, 0
        %1387 = vmatprep.subr.bf16.mxu0 0
        %1388 = vmatpush1.bf16.msra.mxu0 %v1385
        %1389 = vmatprep.subr.bf16.mxu0 0
        %1390 = vmatpush1.bf16.msra.mxu0 0
        %1391 = vmatprep.subr.bf16.mxu0 0
        %1392 = vmatpush1.bf16.msra.mxu0 0
        %1393 = vmatprep.subr.bf16.mxu0 0
        %1394 = vmatpush1.bf16.msra.mxu0 0
        %1395 = vmatprep.subr.bf16.mxu0 0
        %1396 = vmatpush1.bf16.msra.mxu0 0
        %1397 = vmatprep.subr.bf16.mxu0 0
        %1398 = vmatpush1.bf16.msra.mxu0 0
        %1399 = vmatprep.subr.bf16.mxu0 0
        %1400 = vmatpush1.bf16.msra.mxu0 0
        %1401 = vmatprep.subr.bf16.mxu0 0
        %1402 = vmatpush1.bf16.msra.mxu0 0
        %1403 = vmatprep.subr.bf16.mxu0 0
        %1404 = vmatpush1.bf16.msra.mxu0 0
        %1405 = vmatprep.subr.bf16.mxu0 0
        %1406 = vmatpush1.bf16.msra.mxu0 0
        %1407 = vmatprep.subr.bf16.mxu0 0
        %1408 = vmatpush1.bf16.msra.mxu0 0
        %1409 = vmatprep.subr.bf16.mxu0 0
        %1410 = vmatpush1.bf16.msra.mxu0 0
        %1411 = vmatprep.subr.bf16.mxu0 0
        %1412 = vmatpush1.bf16.msra.mxu0 0
        %1413 = vmatprep.subr.bf16.mxu0 0
        %1414 = vmatpush1.bf16.msra.mxu0 0
        %1415 = vmatprep.subr.bf16.mxu0 0
        %1416 = vmatpush1.bf16.msra.mxu0 0
        %1417 = vmatprep.subr.bf16.mxu0 0
        %1418 = vmatpush1.bf16.msra.mxu0 0
        %1419 = vmatprep.mubr.bf16.mxu0 0
        %1420 = vmatmul.mubr.bf16.gmra.mrb[0].mxu0 %v1382
        %v1421 = vpop.f32.mrb[0].mxu0
        %v1422 = vadd.f32 0.0, %v1421
        %v1423 = vpop.f32.mrb[0].mxu0
        %v1424 = vpop.f32.mrb[0].mxu0
        %v1425 = vpop.f32.mrb[0].mxu0
        %1426 = vdwg.mxu0
        %v1427 = vpack.c.bf16 %v1374, %v1374
        %v1428 = vpack.c.bf16 %v1422, %v1422
        %v1429 = vld [vmem:[%s835] sm:$0xf]
        %v1430 = vld [vmem:[%s835 + $0x4] sm:$0xf]
        %v1431 = vld [vmem:[%s835 + $0x8] sm:$0xf]
        %v1432 = vld [vmem:[%s835 + $0xc] sm:$0xf]
        %v1435 = vunpack.c.l.b16 %v1429
        %v1436 = vunpack.c.l.b16 %v1430
        %v1437 = vpack.c.b16 %v1436, %v1435
        %v1440 = vsel %vm1202, %v1427, 0
        %1442 = vmatprep.subr.bf16.mxu0 0
        %1443 = vmatpush1.bf16.msra.mxu0 %v1437
        %1444 = vmatprep.subr.bf16.mxu0 0
        %1445 = vmatpush1.bf16.msra.mxu0 0
        %1446 = vmatprep.subr.bf16.mxu0 0
        %1447 = vmatpush1.bf16.msra.mxu0 0
        %1448 = vmatprep.subr.bf16.mxu0 0
        %1449 = vmatpush1.bf16.msra.mxu0 0
        %1450 = vmatprep.subr.bf16.mxu0 0
        %1451 = vmatpush1.bf16.msra.mxu0 0
        %1452 = vmatprep.subr.bf16.mxu0 0
        %1453 = vmatpush1.bf16.msra.mxu0 0
        %1454 = vmatprep.subr.bf16.mxu0 0
        %1455 = vmatpush1.bf16.msra.mxu0 0
        %1456 = vmatprep.subr.bf16.mxu0 0
        %1457 = vmatpush1.bf16.msra.mxu0 0
        %1458 = vmatprep.subr.bf16.mxu0 0
        %1459 = vmatpush1.bf16.msra.mxu0 0
        %1460 = vmatprep.subr.bf16.mxu0 0
        %1461 = vmatpush1.bf16.msra.mxu0 0
        %1462 = vmatprep.subr.bf16.mxu0 0
        %1463 = vmatpush1.bf16.msra.mxu0 0
        %1464 = vmatprep.subr.bf16.mxu0 0
        %1465 = vmatpush1.bf16.msra.mxu0 0
        %1466 = vmatprep.subr.bf16.mxu0 0
        %1467 = vmatpush1.bf16.msra.mxu0 0
        %1468 = vmatprep.subr.bf16.mxu0 0
        %1469 = vmatpush1.bf16.msra.mxu0 0
        %1470 = vmatprep.subr.bf16.mxu0 0
        %1471 = vmatpush1.bf16.msra.mxu0 0
        %1472 = vmatprep.subr.bf16.mxu0 0
        %1473 = vmatpush1.bf16.msra.mxu0 0
        %1474 = vmatprep.mubr.bf16.mxu0 0
        %1475 = vmatmul.mubr.bf16.gmra.mrb[0].mxu0 %v1440
        %v1476 = vpop.f32.mrb[0].mxu0
        %v1477 = vadd.f32 0.0, %v1476
        %v1478 = vpop.f32.mrb[0].mxu0
        %v1479 = vpop.f32.mrb[0].mxu0
        %v1480 = vpop.f32.mrb[0].mxu0
        %1481 = vdwg.mxu0
        %v1484 = vunpack.c.l.b16 %v1431
        %v1485 = vunpack.c.l.b16 %v1432
        %v1486 = vpack.c.b16 %v1485, %v1484
        %v1489 = vsel %vm1202, %v1428, 0
        %1491 = vmatprep.subr.bf16.mxu0 0
        %1492 = vmatpush1.bf16.msra.mxu0 %v1486
        %1493 = vmatprep.subr.bf16.mxu0 0
        %1494 = vmatpush1.bf16.msra.mxu0 0
        %1495 = vmatprep.subr.bf16.mxu0 0
        %1496 = vmatpush1.bf16.msra.mxu0 0
        %1497 = vmatprep.subr.bf16.mxu0 0
        %1498 = vmatpush1.bf16.msra.mxu0 0
        %1499 = vmatprep.subr.bf16.mxu0 0
        %1500 = vmatpush1.bf16.msra.mxu0 0
        %1501 = vmatprep.subr.bf16.mxu0 0
        %1502 = vmatpush1.bf16.msra.mxu0 0
        %1503 = vmatprep.subr.bf16.mxu0 0
        %1504 = vmatpush1.bf16.msra.mxu0 0
        %1505 = vmatprep.subr.bf16.mxu0 0
        %1506 = vmatpush1.bf16.msra.mxu0 0
        %1507 = vmatprep.subr.bf16.mxu0 0
        %1508 = vmatpush1.bf16.msra.mxu0 0
        %1509 = vmatprep.subr.bf16.mxu0 0
        %1510 = vmatpush1.bf16.msra.mxu0 0
        %1511 = vmatprep.subr.bf16.mxu0 0
        %1512 = vmatpush1.bf16.msra.mxu0 0
        %1513 = vmatprep.subr.bf16.mxu0 0
        %1514 = vmatpush1.bf16.msra.mxu0 0
        %1515 = vmatprep.subr.bf16.mxu0 0
        %1516 = vmatpush1.bf16.msra.mxu0 0
        %1517 = vmatprep.subr.bf16.mxu0 0
        %1518 = vmatpush1.bf16.msra.mxu0 0
        %1519 = vmatprep.subr.bf16.mxu0 0
        %1520 = vmatpush1.bf16.msra.mxu0 0
        %1521 = vmatprep.subr.bf16.mxu0 0
        %1522 = vmatpush1.bf16.msra.mxu0 0
        %1523 = vmatprep.mubr.bf16.mxu0 0
        %1524 = vmatmul.mubr.bf16.gmra.mrb[0].mxu0 %v1489
        %v1525 = vpop.f32.mrb[0].mxu0
        %v1526 = vadd.f32 0.0, %v1525
        %v1527 = vpop.f32.mrb[0].mxu0
        %v1528 = vpop.f32.mrb[0].mxu0
        %v1529 = vpop.f32.mrb[0].mxu0
        %1530 = vdwg.mxu0
        %v1531 = vsel %vm1038, %v1477, 0.0
        %v1532 = vsel %vm1038, %v1526, 0.0
        %v1533 = vadd.f32 %v1531, %v1532
        %v1534 = vld [vmem:[%s838] sm:$0x1]
        %v1536 = vlaneseq
        %v1537 = vshrl.u32 %v1536, 7
        %v1538 = vsub.s32 0, %v1537
        %v1539 = vrot.slane %v1534, %v1538
        %v1541 = vadd.f32 %v1533, %v1539
        %v1542 = vadd.f32 %v1541, %v1035
        %v1543 = vld [vmem:[%s841] sm:$0x1]
        %v1544 = vld [vmem:[%s844] sm:$0x1]
        %v1545 = vsel %vm1038, %v1542, 0.0
        %1546 = vadd.xlane.f32.xlu0 %v1545
        %v1547 = vpop.xlane.xlu0 %1546
        %v1548 = vmul.f32 %v1547, %v1042
        %v1549 = vsub.f32 %v1542, %v1548
        %v1550 = vmul.f32 %v1549, %v1549
        %v1551 = vsel %vm1038, %v1550, 0.0
        %1552 = vadd.xlane.f32.xlu0 %v1551
        %v1553 = vpop.xlane.xlu0 %1552
        %v1554 = vmul.f32 %v1553, %v1042
        %v1555 = vadd.f32 %v1554, 1e-05
        %v1556 = vrsqrt.pop %v1555
        %v1557 = vmul.f32 %v1549, %v1556
        %v1559 = vlaneseq
        %v1560 = vshrl.u32 %v1559, 7
        %v1561 = vsub.s32 0, %v1560
        %v1562 = vrot.slane %v1543, %v1561
        %v1564 = vmul.f32 %v1557, %v1562
        %v1566 = vlaneseq
        %v1567 = vshrl.u32 %v1566, 7
        %v1568 = vsub.s32 0, %v1567
        %v1569 = vrot.slane %v1544, %v1568
        %v1571 = vadd.f32 %v1564, %v1569
        %v1572 = vpack.c.bf16 %v1571, %v1571
        %v1573 = vld [vmem:[%s849] sm:$0xf]
        %v1574 = vld [vmem:[%s849 + $0x4] sm:$0xf]
        %v1575 = vld [vmem:[%s849 + $0x8] sm:$0xf]
        %v1576 = vld [vmem:[%s849 + $0xc] sm:$0xf]
        %v1577 = vld [vmem:[%s852] sm:$0x1]
        %v1579 = vlaneseq
        %v1580 = vshrl.u32 %v1579, 7
        %v1581 = vsub.s32 0, %v1580
        %v1582 = vrot.slane %v1577, %v1581
        %v1588 = vunpack.c.l.b16 %v1573
        %v1589 = vunpack.c.l.b16 %v1574
        %v1590 = vunpack.c.l.b16 %v1575
        %v1591 = vunpack.c.l.b16 %v1576
        %v1592 = vpack.c.b16 %v1589, %v1588
        %v1593 = vpack.c.b16 %v1591, %v1590
        %v1597 = vsel %vm1038, %v1572, 0
        %1599 = vmatprep.subr.bf16.mxu0 0
        %1600 = vmatpush1.bf16.msra.mxu0 %v1592
        %1601 = vmatprep.subr.bf16.mxu0 0
        %1602 = vmatpush1.bf16.msra.mxu0 %v1593
        %1603 = vmatprep.subr.bf16.mxu0 0
        %1604 = vmatpush1.bf16.msra.mxu0 0
        %1605 = vmatprep.subr.bf16.mxu0 0
        %1606 = vmatpush1.bf16.msra.mxu0 0
        %1607 = vmatprep.subr.bf16.mxu0 0
        %1608 = vmatpush1.bf16.msra.mxu0 0
        %1609 = vmatprep.subr.bf16.mxu0 0
        %1610 = vmatpush1.bf16.msra.mxu0 0
        %1611 = vmatprep.subr.bf16.mxu0 0
        %1612 = vmatpush1.bf16.msra.mxu0 0
        %1613 = vmatprep.subr.bf16.mxu0 0
        %1614 = vmatpush1.bf16.msra.mxu0 0
        %1615 = vmatprep.subr.bf16.mxu0 0
        %1616 = vmatpush1.bf16.msra.mxu0 0
        %1617 = vmatprep.subr.bf16.mxu0 0
        %1618 = vmatpush1.bf16.msra.mxu0 0
        %1619 = vmatprep.subr.bf16.mxu0 0
        %1620 = vmatpush1.bf16.msra.mxu0 0
        %1621 = vmatprep.subr.bf16.mxu0 0
        %1622 = vmatpush1.bf16.msra.mxu0 0
        %1623 = vmatprep.subr.bf16.mxu0 0
        %1624 = vmatpush1.bf16.msra.mxu0 0
        %1625 = vmatprep.subr.bf16.mxu0 0
        %1626 = vmatpush1.bf16.msra.mxu0 0
        %1627 = vmatprep.subr.bf16.mxu0 0
        %1628 = vmatpush1.bf16.msra.mxu0 0
        %1629 = vmatprep.subr.bf16.mxu0 0
        %1630 = vmatpush1.bf16.msra.mxu0 0
        %1631 = vmatprep.mubr.bf16.mxu0 0
        %1632 = vmatmul.mubr.bf16.gmra.mrb[0].mxu0 %v1597
        %v1633 = vpop.f32.mrb[0].mxu0
        %v1634 = vadd.f32 %v1582, %v1633
        %v1635 = vpop.f32.mrb[0].mxu0
        %v1636 = vpop.f32.mrb[0].mxu0
        %v1637 = vpop.f32.mrb[0].mxu0
        %1638 = vdwg.mxu0
        %v1639 = vmul.f32 %v1634, 0.5
        %v1640 = vmul.f32 %v1634, 0.044715
        %v1641 = vmul.f32 %v1640, %v1634
        %v1642 = vmul.f32 %v1641, %v1634
        %v1643 = vadd.f32 %v1634, %v1642
        %v1644 = vmul.f32 %v1643, 0.7978846
        %v1645 = vtanh.pop %v1644
        %v1646 = vadd.f32 %v1645, 1.0
        %v1647 = vmul.f32 %v1639, %v1646
        %v1648 = vpack.c.bf16 %v1647, %v1647
        %v1649 = vld [vmem:[%s857] sm:$0xf]
        %v1650 = vld [vmem:[%s857 + $0x4] sm:$0xf]
        %v1651 = vld [vmem:[%s857 + $0x8] sm:$0xf]
        %v1652 = vld [vmem:[%s857 + $0xc] sm:$0xf]
        %v1653 = vld [vmem:[%s857 + $0x10] sm:$0xf]
        %v1654 = vld [vmem:[%s857 + $0x14] sm:$0xf]
        %v1655 = vld [vmem:[%s857 + $0x18] sm:$0xf]
        %v1656 = vld [vmem:[%s857 + $0x1c] sm:$0xf]
        %v1657 = vld [vmem:[%s860] sm:$0x1]
        %v1659 = vlaneseq
        %v1660 = vshrl.u32 %v1659, 7
        %v1661 = vsub.s32 0, %v1660
        %v1662 = vrot.slane %v1657, %v1661
        %v1672 = vunpack.c.l.b16 %v1649
        %v1673 = vunpack.c.l.b16 %v1650
        %v1674 = vunpack.c.l.b16 %v1651
        %v1675 = vunpack.c.l.b16 %v1652
        %v1676 = vunpack.c.l.b16 %v1653
        %v1677 = vunpack.c.l.b16 %v1654
        %v1678 = vunpack.c.l.b16 %v1655
        %v1679 = vunpack.c.l.b16 %v1656
        %v1680 = vpack.c.b16 %v1673, %v1672
        %v1681 = vpack.c.b16 %v1675, %v1674
        %v1682 = vpack.c.b16 %v1677, %v1676
        %v1683 = vpack.c.b16 %v1679, %v1678
        %vm1688 = vcmask 523264
        %v1690 = vsel %vm1688, %v1648, 0
        %1692 = vmatprep.subr.bf16.mxu0 0
        %1693 = vmatpush1.bf16.msra.mxu0 %v1680
        %1694 = vmatprep.subr.bf16.mxu0 0
        %1695 = vmatpush1.bf16.msra.mxu0 %v1681
        %1696 = vmatprep.subr.bf16.mxu0 0
        %1697 = vmatpush1.bf16.msra.mxu0 %v1682
        %1698 = vmatprep.subr.bf16.mxu0 0
        %1699 = vmatpush1.bf16.msra.mxu0 %v1683
        %1700 = vmatprep.subr.bf16.mxu0 0
        %1701 = vmatpush1.bf16.msra.mxu0 0
        %1702 = vmatprep.subr.bf16.mxu0 0
        %1703 = vmatpush1.bf16.msra.mxu0 0
        %1704 = vmatprep.subr.bf16.mxu0 0
        %1705 = vmatpush1.bf16.msra.mxu0 0
        %1706 = vmatprep.subr.bf16.mxu0 0
        %1707 = vmatpush1.bf16.msra.mxu0 0
        %1708 = vmatprep.subr.bf16.mxu0 0
        %1709 = vmatpush1.bf16.msra.mxu0 0
        %1710 = vmatprep.subr.bf16.mxu0 0
        %1711 = vmatpush1.bf16.msra.mxu0 0
        %1712 = vmatprep.subr.bf16.mxu0 0
        %1713 = vmatpush1.bf16.msra.mxu0 0
        %1714 = vmatprep.subr.bf16.mxu0 0
        %1715 = vmatpush1.bf16.msra.mxu0 0
        %1716 = vmatprep.subr.bf16.mxu0 0
        %1717 = vmatpush1.bf16.msra.mxu0 0
        %1718 = vmatprep.subr.bf16.mxu0 0
        %1719 = vmatpush1.bf16.msra.mxu0 0
        %1720 = vmatprep.subr.bf16.mxu0 0
        %1721 = vmatpush1.bf16.msra.mxu0 0
        %1722 = vmatprep.subr.bf16.mxu0 0
        %1723 = vmatpush1.bf16.msra.mxu0 0
        %1724 = vmatprep.mubr.bf16.mxu0 0
        %1725 = vmatmul.mubr.bf16.gmra.mrb[0].mxu0 %v1690
        %v1726 = vpop.f32.mrb[0].mxu0
        %v1727 = vadd.f32 %v1662, %v1726
        %v1728 = vpop.f32.mrb[0].mxu0
        %v1729 = vpop.f32.mrb[0].mxu0
        %v1730 = vpop.f32.mrb[0].mxu0
        %1731 = vdwg.mxu0
        %v1732 = vadd.f32 %v1727, %v1542
        %1733 = vst.msk [vmem:[#allocation2] sm:$0xff] %vm1038, %v1732
        %p1734 = scmp.eq.s32.totalorder %s40, 1
        // Predicated region
        $region109: #{blip_for_image_classification.1} parent=103 // pred_check
          %p1735 = pneg %p1734
        $region110: #{blip_for_image_classification.1} parent=103 // pred_check_branch
          %1737 = sbr.rel (%p1735) target = $region112
        $region111: #{blip_for_image_classification.1} parent=103 // pred_region
          %v1738 = vld [vmem:[%s17] sm:$0x1]
          %v1739 = vld [vmem:[%s18] sm:$0x1]
          %vm1740 = vcmask 253952
          %v1741 = vsel %vm1740, %v1732, 0.0
          %1742 = vadd.xlane.f32.xlu0 %v1741
          %v1743 = vpop.xlane.xlu0 %1742
          %v1744 = vmul.f32 %v1743, %v1042
          %v1745 = vsub.f32 %v1732, %v1744
          %v1746 = vmul.f32 %v1745, %v1745
          %v1747 = vsel %vm1740, %v1746, 0.0
          %1748 = vadd.xlane.f32.xlu0 %v1747
          %v1749 = vpop.xlane.xlu0 %1748
          %v1750 = vmul.f32 %v1749, %v1042
          %v1751 = vadd.f32 %v1750, 1e-05
          %v1752 = vrsqrt.pop %v1751
          %v1753 = vmul.f32 %v1745, %v1752
          %v1754 = vmul.f32 %v1753, %v1738
          %v1755 = vadd.f32 %v1754, %v1739
          %v1756 = vsel %vm1740, %v1755, 0.0
          %1757 = vadd.xlane.f32.xlu0 %v1756
          %v1758 = vpop.xlane.xlu0 %1757
          %v1759 = vmul.f32 %v1758, %v1042
          %v1760 = vsub.f32 %v1755, %v1759
          %v1761 = vmul.f32 %v1760, %v1760
          %v1762 = vsel %vm1740, %v1761, 0.0
          %1763 = vadd.xlane.f32.xlu0 %v1762
          %v1764 = vpop.xlane.xlu0 %1763
          %v1765 = vmul.f32 %v1764, %v1042
          %v1766 = vadd.f32 %v1765, 1e-05
          %v1767 = vrsqrt.pop %v1766
          %v1768 = vmul.f32 %v1760, %v1767
          %v1769 = vmul.f32 %v1768, %v1738
          %v1770 = vadd.f32 %v1769, %v1739
          %v1771 = vpack.c.bf16 %v1770, %v1770
          %v1772 = vld [vmem:[%s19] sm:$0xf]
          %v1773 = vld [vmem:[%s19 + $0x4] sm:$0xf]
          %v1774 = vld [vmem:[%s19 + $0x8] sm:$0xf]
          %v1775 = vld [vmem:[%s19 + $0xc] sm:$0xf]
          %v1776 = vld [vmem:[%s20] sm:$0x1]
          %v1781 = vunpack.c.l.b16 %v1772
          %v1782 = vunpack.c.l.b16 %v1773
          %v1783 = vunpack.c.l.b16 %v1774
          %v1784 = vunpack.c.l.b16 %v1775
          %v1785 = vpack.c.b16 %v1782, %v1781
          %v1786 = vpack.c.b16 %v1784, %v1783
          %v1790 = vsel %vm1038, %v1771, 0
          %1792 = vmatprep.subr.bf16.mxu0 0
          %1793 = vmatpush1.bf16.msra.mxu0 %v1785
          %1794 = vmatprep.subr.bf16.mxu0 0
          %1795 = vmatpush1.bf16.msra.mxu0 %v1786
          %1796 = vmatprep.subr.bf16.mxu0 0
          %1797 = vmatpush1.bf16.msra.mxu0 0
          %1798 = vmatprep.subr.bf16.mxu0 0
          %1799 = vmatpush1.bf16.msra.mxu0 0
          %1800 = vmatprep.subr.bf16.mxu0 0
          %1801 = vmatpush1.bf16.msra.mxu0 0
          %1802 = vmatprep.subr.bf16.mxu0 0
          %1803 = vmatpush1.bf16.msra.mxu0 0
          %1804 = vmatprep.subr.bf16.mxu0 0
          %1805 = vmatpush1.bf16.msra.mxu0 0
          %1806 = vmatprep.subr.bf16.mxu0 0
          %1807 = vmatpush1.bf16.msra.mxu0 0
          %1808 = vmatprep.subr.bf16.mxu0 0
          %1809 = vmatpush1.bf16.msra.mxu0 0
          %1810 = vmatprep.subr.bf16.mxu0 0
          %1811 = vmatpush1.bf16.msra.mxu0 0
          %1812 = vmatprep.subr.bf16.mxu0 0
          %1813 = vmatpush1.bf16.msra.mxu0 0
          %1814 = vmatprep.subr.bf16.mxu0 0
          %1815 = vmatpush1.bf16.msra.mxu0 0
          %1816 = vmatprep.subr.bf16.mxu0 0
          %1817 = vmatpush1.bf16.msra.mxu0 0
          %1818 = vmatprep.subr.bf16.mxu0 0
          %1819 = vmatpush1.bf16.msra.mxu0 0
          %1820 = vmatprep.subr.bf16.mxu0 0
          %1821 = vmatpush1.bf16.msra.mxu0 0
          %1822 = vmatprep.subr.bf16.mxu0 0
          %1823 = vmatpush1.bf16.msra.mxu0 0
          %1824 = vmatprep.mubr.bf16.mxu0 0
          %1825 = vmatmul.mubr.bf16.gmra.mrb[0].mxu0 %v1790
          %v1826 = vpop.f32.mrb[0].mxu0
          %v1827 = vadd.f32 %v1776, %v1826
          %v1828 = vpop.f32.mrb[0].mxu0
          %v1829 = vpop.f32.mrb[0].mxu0
          %v1830 = vpop.f32.mrb[0].mxu0
          %1831 = vdwg.mxu0
          %1832 = vst [vmem:[%s810] sm:$0x1] %v1827
        $region112: #{blip_for_image_classification.1} parent=103 // pred_fallthru
          _
        %s1833 = sand.u32 %s561, 1
        %s1834 = scalar_lea.sflag [#allocation4], %s1833
        %s1835 = sand.u32 %s561, 1
        %s1836 = scalar_lea.vmem [#allocation3], %s1835
        // Predicated region
        $region113: #{blip_for_image_classification.1} parent=103 // pred_check
          %p1837 = pneg %p571
        $region114: #{blip_for_image_classification.1} parent=103 // pred_check_branch
          %1839 = sbr.rel (%p1837) target = $region116
        $region115: #{blip_for_image_classification.1} parent=103 // pred_region
          %s1841 = ssub.s32 16, 16
          %1842 = vsyncadd %s1834, %s1841
          %s1843 = smul.addr %s39, 16
          %s1844 = scalar_lea.hbm %s21, %s1843
          %s1846 = sshll.u32 %s1836, 4
          %s1847 = int_to_ptr.vmem [resolvable:$true] %s1846
          %1849 = dma.vmem_to_hbm [thread:$0]  %s1847, 16, %s1844, %s1834
        $region116: #{blip_for_image_classification.1} parent=103 // pred_fallthru
          _
      $region104: #{blip_for_image_classification.1} parent=5 // pred_fallthru
        _
      %p1850 = scmp.le.s32.totalorder 2, %s30
      // Predicated region
      $region117: #{blip_for_image_classification.1} parent=5 // pred_check
        %p1851 = pneg %p1850
      $region118: #{blip_for_image_classification.1} parent=5 // pred_check_branch
        %1853 = sbr.rel (%p1851) target = $region120
      $region119: #{blip_for_image_classification.1} parent=5 // pred_region
        %s1854 = ssub.s32 %s30, 2
        // Predicated region
        $region121: #{blip_for_image_classification.1} parent=119 // pred_check
          %p1855 = pneg %p577
        $region122: #{blip_for_image_classification.1} parent=119 // pred_check_branch
          %1857 = sbr.rel (%p1855) target = $region124
        $region123: #{blip_for_image_classification.1} parent=119 // pred_region
          %s1858 = sand.u32 %s562, 1
          %s1859 = scalar_lea.sflag [#allocation4], %s1858
          %s1860 = sand.u32 %s562, 1
          %s1861 = scalar_lea.vmem [#allocation3], %s1860
          %1862 = dma.done %s1859, 16
        $region124: #{blip_for_image_classification.1} parent=119 // pred_fallthru
          _
      $region120: #{blip_for_image_classification.1} parent=5 // pred_fallthru
        _
    $region6: #{blip_for_image_classification.1} parent=1 // loop_footer
      %s34 = sadd.s32 1, %s30
    $region7: #{blip_for_image_classification.1} parent=1 // loop_footer_branch
      %29 = sbr.rel target = $region3
    $region8: #{blip_for_image_classification.1} parent=1 // loop_exit
      _
    %1863 = vsyncpa [#allocation4], 1
    %s1864 = scalar_lea.sflag [#allocation4], 1
    %1865 = vsyncpa %s1864, 1

</llo_original>
